<compile_context>
chip_gen: v7x
topology: tpu7x:2x2x1
jax: 0.10.0
libtpu: 0.0.40
codegen_flags: <defaults>
</compile_context>

<pallas_src>
import functools

import jax
import jax.numpy as jnp
from jax import lax
from jax.experimental import pallas as pl
from jax.experimental.pallas import tpu as pltpu

EPS = 1e-5
PAD_MAX = 62  # max height padding over the three vertical-conv branches

# (weight key, bias key, kernel height, height padding); shortcut = 1x1 conv.
_BRANCHES = (("w1", "b1", 25, 12),
             ("w2", "b2", 75, 37),
             ("w3", "b3", 125, 62),
             ("wsc", "bsc", 1, 0))


def _round_up(x, m):
    return (x + m - 1) // m * m


def _pick_dim(d, unit, pref):
    """Pad `d` to a TPU-tile-friendly size and pick a tile that divides it."""
    dp = _round_up(d, unit)
    if dp <= pref:
        return dp, dp                       # single full-extent tile
    return _round_up(d, pref), pref


# ----------------------------- Pallas kernels ------------------------------ #

def _matmul_kernel(a_ref, b_ref, o_ref, acc_ref):
    # Reduction (K) is the last grid axis; accumulate in a VMEM f32 scratch.
    @pl.when(pl.program_id(2) == 0)
    def _init():
        acc_ref[...] = jnp.zeros_like(acc_ref)

    acc_ref[...] += jnp.dot(a_ref[...], b_ref[...],
                            preferred_element_type=jnp.float32)

    @pl.when(pl.program_id(2) == pl.num_programs(2) - 1)
    def _done():
        o_ref[...] = acc_ref[...]


def pallas_matmul(a_bf16, b_bf16, tm, tn, tk):
    """(Mp,Kp) @ (Kp,Np): bf16 operands on the MXU, f32 accumulation/output."""
    Mp, Kp = a_bf16.shape
    Kp2, Np = b_bf16.shape
    assert Kp == Kp2 and Mp % tm == 0 and Np % tn == 0 and Kp % tk == 0
    return pl.pallas_call(
        _matmul_kernel,
        out_shape=jax.ShapeDtypeStruct((Mp, Np), jnp.float32),
        grid=(Mp // tm, Np // tn, Kp // tk),
        in_specs=[pl.BlockSpec((tm, tk), lambda i, j, k: (i, k)),
                  pl.BlockSpec((tk, tn), lambda i, j, k: (k, j))],
        out_specs=pl.BlockSpec((tm, tn), lambda i, j, k: (i, j)),
        scratch_shapes=[pltpu.VMEM((tm, tn), jnp.float32)],
        compiler_params=pltpu.CompilerParams(
            dimension_semantics=("parallel", "parallel", "arbitrary")),
    )(a_bf16, b_bf16)


def _relu_sum(o, hc):
    # Columns are laid out as [branch1 | branch2 | branch3 | shortcut],
    # each chunk hc = Ho*Cout wide (a multiple of 128 lanes at the test shape).
    return (jnp.maximum(o[:, 0 * hc:1 * hc], 0.0)
            + jnp.maximum(o[:, 1 * hc:2 * hc], 0.0)
            + jnp.maximum(o[:, 2 * hc:3 * hc], 0.0))


def _combine_stats_kernel(o_ref, sum_ref, sq_ref, *, hc):
    @pl.when(pl.program_id(0) == 0)
    def _init():
        sum_ref[...] = jnp.zeros_like(sum_ref)
        sq_ref[...] = jnp.zeros_like(sq_ref)

    s = _relu_sum(o_ref[...], hc)
    sum_ref[...] += jnp.sum(s, axis=0, keepdims=True)
    sq_ref[...] += jnp.sum(s * s, axis=0, keepdims=True)


def pallas_combine_stats(o, hc, tm):
    Mp, Nc = o.shape
    return pl.pallas_call(
        functools.partial(_combine_stats_kernel, hc=hc),
        out_shape=(jax.ShapeDtypeStruct((1, hc), jnp.float32),
                   jax.ShapeDtypeStruct((1, hc), jnp.float32)),
        grid=(Mp // tm,),
        in_specs=[pl.BlockSpec((tm, Nc), lambda i: (i, 0))],
        out_specs=(pl.BlockSpec((1, hc), lambda i: (0, 0)),
                   pl.BlockSpec((1, hc), lambda i: (0, 0))),
        compiler_params=pltpu.CompilerParams(
            dimension_semantics=("arbitrary",)),
    )(o)


def _bn_finalize_kernel(o_ref, scale_ref, shift_ref, out_ref, *, hc):
    o = o_ref[...]
    s = _relu_sum(o, hc)
    p4 = o[:, 3 * hc:4 * hc]                       # shortcut branch (no relu)
    out_ref[...] = jnp.maximum(s * scale_ref[...] + shift_ref[...] + p4, 0.0)


def pallas_bn_finalize(o, scale_row, shift_row, hc, tm):
    Mp, Nc = o.shape
    return pl.pallas_call(
        functools.partial(_bn_finalize_kernel, hc=hc),
        out_shape=jax.ShapeDtypeStruct((Mp, hc), jnp.float32),
        grid=(Mp // tm,),
        in_specs=[pl.BlockSpec((tm, Nc), lambda i: (i, 0)),
                  pl.BlockSpec((1, hc), lambda i: (0, 0)),
                  pl.BlockSpec((1, hc), lambda i: (0, 0))],
        out_specs=pl.BlockSpec((tm, hc), lambda i: (i, 0)),
        compiler_params=pltpu.CompilerParams(
            dimension_semantics=("parallel",)),
    )(o, scale_row, shift_row)


# ------------------------ weight band-matrix builder ------------------------ #

def _band_matrix(w, kh, ph, Hp, Ho, pad_max):
    """Dense (Hp*Cin, Ho*Cout) matrix equivalent to a (kh,1)-kernel conv with
    height padding `ph` and stride 2, acting on input pre-padded by pad_max."""
    cout, cin = w.shape[0], w.shape[1]
    wt = jnp.transpose(w[:, :, :, 0], (2, 1, 0))            # (kh, Cin, Cout)
    h = jnp.arange(Hp)[:, None]                              # padded input row
    ho = jnp.arange(Ho)[None, :]                              # output row
    tap = h - 2 * ho - (pad_max - ph)                         # kernel tap index
    valid = (tap >= 0) & (tap < kh)
    g = wt[jnp.clip(tap, 0, kh - 1)]                          # (Hp, Ho, Cin, Cout)
    g = jnp.where(valid[:, :, None, None], g, 0.0)
    g = jnp.transpose(g, (0, 2, 1, 3))                        # (Hp, Cin, Ho, Cout)
    return g.reshape(Hp * cin, Ho * cout)


# --------------------------------- forward ---------------------------------- #

def vertical_inception_forward(params, x):
    x = jnp.asarray(x, jnp.float32)                           # NCHW
    n, cin, hdim, wdim = x.shape
    cout = params["w1"].shape[0]
    ho = (hdim - 1) // 2 + 1                                  # same for all branches
    wo = (wdim - 1) // 2 + 1
    hp = hdim + 2 * PAD_MAX
    hc = ho * cout                                            # per-branch column chunk

    # --- activations: pad height once, stride-2 width, rows=(n,wo), red=(h,ci) ---
    xp = jnp.pad(x, ((0, 0), (0, 0), (PAD_MAX, PAD_MAX), (0, 0)))
    xs = xp[:, :, :, ::2]                                     # kw=1, stride-2 width
    a = jnp.transpose(xs, (0, 3, 2, 1)).reshape(n * wo, hp * cin)
    a = jnp.concatenate([a, jnp.ones((n * wo, 1), jnp.float32)], axis=1)  # bias col

    # --- all four branches + their biases as one band weight matrix ---
    bcols, biases = [], []
    for wk, bk, kh, ph in _BRANCHES:
        bcols.append(_band_matrix(params[wk], kh, ph, hp, ho, PAD_MAX))
        biases.append(jnp.tile(params[bk], ho))
    bmat = jnp.concatenate(bcols, axis=1)                     # (Hp*Cin, 4*hc)
    bmat = jnp.concatenate([bmat, jnp.concatenate(biases)[None, :]], axis=0)

    # --- pad to tile multiples, cast to bf16, one tiled MXU matmul ---
    m1, k1 = a.shape
    n1 = bmat.shape[1]
    mp, tm = _pick_dim(m1, 8, 128)
    kp, tk = _pick_dim(k1, 128, 512)
    np_, tn = _pick_dim(n1, 128, 256)
    a_p = jnp.pad(a, ((0, mp - m1), (0, kp - k1))).astype(jnp.bfloat16)
    b_p = jnp.pad(bmat, ((0, kp - k1), (0, np_ - n1))).astype(jnp.bfloat16)

    o = pallas_matmul(a_p, b_p, tm, tn, tk)                   # (Mp, Np) f32
    if np_ != n1:
        o = o[:, :n1]

    # --- fused relu-sum + BN batch statistics (padded rows contribute zero) ---
    s_sum, s_sq = pallas_combine_stats(o, hc, tm)
    count = jnp.float32(n * wo * ho)
    mean = s_sum.reshape(ho, cout).sum(0) / count
    ex2 = s_sq.reshape(ho, cout).sum(0) / count
    var = jnp.maximum(ex2 - mean * mean, 0.0)                 # biased var (training BN)
    scale_c = params["gamma"] * lax.rsqrt(var + EPS)
    shift_c = params["beta"] - mean * scale_c
    scale_row = jnp.tile(scale_c, ho)[None, :]                # (1, hc)
    shift_row = jnp.tile(shift_c, ho)[None, :]

    # --- fused BN affine + shortcut add + ReLU ---
    out2d = pallas_bn_finalize(o, scale_row, shift_row, hc, tm)   # (Mp, hc)
    if mp != m1:
        out2d = out2d[:m1]
    out = out2d.reshape(n, wo, ho, cout)
    return jnp.transpose(out, (0, 3, 2, 1))                   # NCHW: (N, Cout, Ho, Wo)


# ------------------------------ parameter init ------------------------------ #

def init_params(key, in_channels, out_channels):
    """PyTorch-default Conv2d init (U(-1/sqrt(fan_in), ...)) and fresh BN."""
    keys = jax.random.split(key, len(_BRANCHES))
    p = {}
    for (wk, bk, kh, _), k2 in zip(_BRANCHES, keys):
        fan_in = in_channels * kh
        bound = fan_in ** -0.5
        kw_, kb_ = jax.random.split(k2)
        p[wk] = jax.random.uniform(kw_, (out_channels, in_channels, kh, 1),
                                   jnp.float32, -bound, bound)
        p[bk] = jax.random.uniform(kb_, (out_channels,), jnp.float32, -bound, bound)
    p["gamma"] = jnp.ones((out_channels,), jnp.float32)
    p["beta"] = jnp.zeros((out_channels,), jnp.float32)
    return p


# ---------------------------------- main ------------------------------------ #

if __name__ == "__main__":
    key = jax.random.PRNGKey(0)
    pkey, xkey = jax.random.split(key)
    # Tall "vertical" input (the 125-high kernels imply a long height axis).
    N, CIN, COUT, H, W = 2, 4, 8, 128, 16   # -> Ho=64, Wo=8, Ho*Cout=512 (lane-dense)
    params = init_params(pkey, CIN, COUT)
    x = jax.random.normal(xkey, (N, CIN, H, W), jnp.float32)

    fwd = jax.jit(vertical_inception_forward)
    out = fwd(params, x)
    jax.block_until_ready(out)

    Ho, Wo = (H - 1) // 2 + 1, (W - 1) // 2 + 1
    assert out.shape == (N, COUT, Ho, Wo), out.shape
    assert bool(jnp.all(jnp.isfinite(out)))
    print("KERNEL_OK")
</pallas_src>

<mosaic_0001>
module attributes {stable_mosaic.version = 11 : i64} {
  func.func @_matmul_kernel(%arg0: i32, %arg1: i32, %arg2: i32, %arg3: memref<16x512xbf16, #tpu.memory_space<vmem>>, %arg4: memref<512x256xbf16, #tpu.memory_space<vmem>>, %arg5: memref<16x256xf32, #tpu.memory_space<vmem>>, %arg6: memref<16x256xf32, #tpu.memory_space<vmem>>) attributes {dimension_semantics = [#tpu.dimension_semantics<parallel>, #tpu.dimension_semantics<parallel>, #tpu.dimension_semantics<arbitrary>], iteration_bounds = array<i64: 1, 8, 2>, scalar_prefetch = 0 : i64, scratch_operands = 1 : i64, tpu.core_type = #tpu.core_type<tc>, window_params = [{transform_indices = @transform_0, window_bounds = array<i64: 16, 512>}, {transform_indices = @transform_1, window_bounds = array<i64: 512, 256>}, {transform_indices = @transform_2, window_bounds = array<i64: 16, 256>}]} {
    %c0_i32 = arith.constant 0 : i32
    %0 = arith.cmpi eq, %arg2, %c0_i32 : i32
    %1 = arith.extui %0 : i1 to i32
    %c0_i32_0 = arith.constant 0 : i32
    %2 = arith.cmpi ne, %1, %c0_i32_0 : i32
    scf.if %2 {
      %cst_9 = arith.constant 0.000000e+00 : f32
      %12 = vector.broadcast %cst_9 : f32 to vector<16x256xf32>
      %c0_10 = arith.constant 0 : index
      %c0_11 = arith.constant 0 : index
      %13 = vector.load %arg6[%c0_10, %c0_11] : memref<16x256xf32, #tpu.memory_space<vmem>>, vector<16x256xf32>
      tpu.vector_store %arg6[%c0_10, %c0_11], %12 {strides = array<i32>} : memref<16x256xf32, #tpu.memory_space<vmem>>, vector<16x256xf32>,
    } else {
    }
    %c0 = arith.constant 0 : index
    %c0_1 = arith.constant 0 : index
    %3 = vector.load %arg6[%c0, %c0_1] : memref<16x256xf32, #tpu.memory_space<vmem>>, vector<16x256xf32>
    %c0_2 = arith.constant 0 : index
    %c0_3 = arith.constant 0 : index
    %4 = vector.load %arg3[%c0_2, %c0_3] : memref<16x512xbf16, #tpu.memory_space<vmem>>, vector<16x512xbf16>
    %c0_4 = arith.constant 0 : index
    %c0_5 = arith.constant 0 : index
    %5 = vector.load %arg4[%c0_4, %c0_5] : memref<512x256xbf16, #tpu.memory_space<vmem>>, vector<512x256xbf16>
    %cst = arith.constant dense<0.000000e+00> : vector<16x256xf32>
    %6 = tpu.matmul %4, %5, %cst {dimension_numbers = #tpu.dot_dimension_numbers<[1], [0], [0], [1], [0, 0, 1, 1], [], []>} : vector<16x512xbf16>, vector<512x256xbf16>, vector<16x256xf32> -> vector<16x256xf32>
    %7 = arith.addf %3, %6 : vector<16x256xf32>
    %c0_6 = arith.constant 0 : index
    %c0_7 = arith.constant 0 : index
    %8 = vector.load %arg6[%c0_6, %c0_7] : memref<16x256xf32, #tpu.memory_space<vmem>>, vector<16x256xf32>
    tpu.vector_store %arg6[%c0_6, %c0_7], %7 {strides = array<i32>} : memref<16x256xf32, #tpu.memory_space<vmem>>, vector<16x256xf32>,
    %c1_i32 = arith.constant 1 : i32
    %9 = arith.cmpi eq, %arg2, %c1_i32 : i32
    %10 = arith.extui %9 : i1 to i32
    %c0_i32_8 = arith.constant 0 : i32
    %11 = arith.cmpi ne, %10, %c0_i32_8 : i32
    scf.if %11 {
      %c0_9 = arith.constant 0 : index
      %c0_10 = arith.constant 0 : index
      %12 = vector.load %arg6[%c0_9, %c0_10] : memref<16x256xf32, #tpu.memory_space<vmem>>, vector<16x256xf32>
      %c0_11 = arith.constant 0 : index
      %c0_12 = arith.constant 0 : index
      %13 = vector.load %arg5[%c0_11, %c0_12] : memref<16x256xf32, #tpu.memory_space<vmem>>, vector<16x256xf32>
      tpu.vector_store %arg5[%c0_11, %c0_12], %12 {strides = array<i32>} : memref<16x256xf32, #tpu.memory_space<vmem>>, vector<16x256xf32>,
    } else {
    }
    return
  }
  func.func @transform_0(%arg0: i32, %arg1: i32, %arg2: i32) -> (i32, i32) {
    %c0_i32 = arith.constant 0 : i32
    return %arg0, %arg2 : i32, i32
  }
  func.func @transform_1(%arg0: i32, %arg1: i32, %arg2: i32) -> (i32, i32) {
    %c0_i32 = arith.constant 0 : i32
    return %arg2, %arg1 : i32, i32
  }
  func.func @transform_2(%arg0: i32, %arg1: i32, %arg2: i32) -> (i32, i32) {
    %c0_i32 = arith.constant 0 : i32
    return %arg0, %arg1 : i32, i32
  }
}

module attributes {stable_mosaic.version = 11 : i64} {
  func.func @_combine_stats_kernel(%arg0: i32, %arg1: memref<16x2048xf32, #tpu.memory_space<vmem>>, %arg2: memref<1x512xf32, #tpu.memory_space<vmem>>, %arg3: memref<1x512xf32, #tpu.memory_space<vmem>>) attributes {dimension_semantics = [#tpu.dimension_semantics<arbitrary>], iteration_bounds = array<i64: 1>, scalar_prefetch = 0 : i64, scratch_operands = 0 : i64, tpu.core_type = #tpu.core_type<tc>, window_params = [{transform_indices = @transform_0, window_bounds = array<i64: 16, 2048>}, {pipeline_mode = #tpu.pipeline_mode<synchronous>, transform_indices = @transform_1, window_bounds = array<i64: 1, 512>}, {pipeline_mode = #tpu.pipeline_mode<synchronous>, transform_indices = @transform_2, window_bounds = array<i64: 1, 512>}]} {
    %c0_i32 = arith.constant 0 : i32
    %0 = arith.cmpi eq, %arg0, %c0_i32 : i32
    %1 = arith.extui %0 : i1 to i32
    %c0_i32_0 = arith.constant 0 : i32
    %2 = arith.cmpi ne, %1, %c0_i32_0 : i32
    scf.if %2 {
      %cst_14 = arith.constant 0.000000e+00 : f32
      %26 = vector.broadcast %cst_14 : f32 to vector<1x512xf32>
      %c0_15 = arith.constant 0 : index
      %c0_16 = arith.constant 0 : index
      %27 = vector.load %arg2[%c0_15, %c0_16] : memref<1x512xf32, #tpu.memory_space<vmem>>, vector<1x512xf32>
      tpu.vector_store %arg2[%c0_15, %c0_16], %26 {strides = array<i32>} : memref<1x512xf32, #tpu.memory_space<vmem>>, vector<1x512xf32>,
      %cst_17 = arith.constant 0.000000e+00 : f32
      %28 = vector.broadcast %cst_17 : f32 to vector<1x512xf32>
      %c0_18 = arith.constant 0 : index
      %c0_19 = arith.constant 0 : index
      %29 = vector.load %arg3[%c0_18, %c0_19] : memref<1x512xf32, #tpu.memory_space<vmem>>, vector<1x512xf32>
      tpu.vector_store %arg3[%c0_18, %c0_19], %28 {strides = array<i32>} : memref<1x512xf32, #tpu.memory_space<vmem>>, vector<1x512xf32>,
    } else {
    }
    %c0 = arith.constant 0 : index
    %c0_1 = arith.constant 0 : index
    %3 = vector.load %arg1[%c0, %c0_1] : memref<16x2048xf32, #tpu.memory_space<vmem>>, vector<16x2048xf32>
    %4 = vector.extract_strided_slice %3 {offsets = [0, 0], sizes = [16, 512], strides = [1, 1]} : vector<16x2048xf32> to vector<16x512xf32>
    %cst = arith.constant 0.000000e+00 : f32
    %5 = vector.broadcast %cst : f32 to vector<16x512xf32>
    %6 = arith.maximumf %4, %5 : vector<16x512xf32>
    %7 = vector.extract_strided_slice %3 {offsets = [0, 512], sizes = [16, 512], strides = [1, 1]} : vector<16x2048xf32> to vector<16x512xf32>
    %cst_2 = arith.constant 0.000000e+00 : f32
    %8 = vector.broadcast %cst_2 : f32 to vector<16x512xf32>
    %9 = arith.maximumf %7, %8 : vector<16x512xf32>
    %10 = arith.addf %6, %9 : vector<16x512xf32>
    %11 = vector.extract_strided_slice %3 {offsets = [0, 1024], sizes = [16, 512], strides = [1, 1]} : vector<16x2048xf32> to vector<16x512xf32>
    %cst_3 = arith.constant 0.000000e+00 : f32
    %12 = vector.broadcast %cst_3 : f32 to vector<16x512xf32>
    %13 = arith.maximumf %11, %12 : vector<16x512xf32>
    %14 = arith.addf %10, %13 : vector<16x512xf32>
    %c0_4 = arith.constant 0 : index
    %c0_5 = arith.constant 0 : index
    %15 = vector.load %arg2[%c0_4, %c0_5] : memref<1x512xf32, #tpu.memory_space<vmem>>, vector<1x512xf32>
    %cst_6 = arith.constant dense<0.000000e+00> : vector<512xf32>
    %16 = vector.multi_reduction <add>, %14, %cst_6 [0] : vector<16x512xf32> to vector<512xf32>
    %17 = vector.shape_cast %16 : vector<512xf32> to vector<1x512xf32>
    %18 = arith.addf %15, %17 : vector<1x512xf32>
    %c0_7 = arith.constant 0 : index
    %c0_8 = arith.constant 0 : index
    %19 = vector.load %arg2[%c0_7, %c0_8] : memref<1x512xf32, #tpu.memory_space<vmem>>, vector<1x512xf32>
    tpu.vector_store %arg2[%c0_7, %c0_8], %18 {strides = array<i32>} : memref<1x512xf32, #tpu.memory_space<vmem>>, vector<1x512xf32>,
    %c0_9 = arith.constant 0 : index
    %c0_10 = arith.constant 0 : index
    %20 = vector.load %arg3[%c0_9, %c0_10] : memref<1x512xf32, #tpu.memory_space<vmem>>, vector<1x512xf32>
    %21 = arith.mulf %14, %14 : vector<16x512xf32>
    %cst_11 = arith.constant dense<0.000000e+00> : vector<512xf32>
    %22 = vector.multi_reduction <add>, %21, %cst_11 [0] : vector<16x512xf32> to vector<512xf32>
    %23 = vector.shape_cast %22 : vector<512xf32> to vector<1x512xf32>
    %24 = arith.addf %20, %23 : vector<1x512xf32>
    %c0_12 = arith.constant 0 : index
    %c0_13 = arith.constant 0 : index
    %25 = vector.load %arg3[%c0_12, %c0_13] : memref<1x512xf32, #tpu.memory_space<vmem>>, vector<1x512xf32>
    tpu.vector_store %arg3[%c0_12, %c0_13], %24 {strides = array<i32>} : memref<1x512xf32, #tpu.memory_space<vmem>>, vector<1x512xf32>,
    return
  }
  func.func @transform_0(%arg0: i32) -> (i32, i32) {
    %c0_i32 = arith.constant 0 : i32
    %c0_i32_0 = arith.constant 0 : i32
    return %arg0, %c0_i32 : i32, i32
  }
  func.func @transform_1(%arg0: i32) -> (i32, i32) {
    %c0_i32 = arith.constant 0 : i32
    %c0_i32_0 = arith.constant 0 : i32
    %c0_i32_1 = arith.constant 0 : i32
    return %c0_i32, %c0_i32_0 : i32, i32
  }
  func.func @transform_2(%arg0: i32) -> (i32, i32) {
    %c0_i32 = arith.constant 0 : i32
    %c0_i32_0 = arith.constant 0 : i32
    %c0_i32_1 = arith.constant 0 : i32
    return %c0_i32, %c0_i32_0 : i32, i32
  }
}

module attributes {stable_mosaic.version = 11 : i64} {
  func.func @_bn_finalize_kernel(%arg0: i32, %arg1: memref<16x2048xf32, #tpu.memory_space<vmem>>, %arg2: memref<1x512xf32, #tpu.memory_space<vmem>>, %arg3: memref<1x512xf32, #tpu.memory_space<vmem>>, %arg4: memref<16x512xf32, #tpu.memory_space<vmem>>) attributes {dimension_semantics = [#tpu.dimension_semantics<parallel>], iteration_bounds = array<i64: 1>, scalar_prefetch = 0 : i64, scratch_operands = 0 : i64, tpu.core_type = #tpu.core_type<tc>, window_params = [{transform_indices = @transform_0, window_bounds = array<i64: 16, 2048>}, {pipeline_mode = #tpu.pipeline_mode<synchronous>, transform_indices = @transform_1, window_bounds = array<i64: 1, 512>}, {pipeline_mode = #tpu.pipeline_mode<synchronous>, transform_indices = @transform_2, window_bounds = array<i64: 1, 512>}, {transform_indices = @transform_3, window_bounds = array<i64: 16, 512>}]} {
    %c0 = arith.constant 0 : index
    %c0_0 = arith.constant 0 : index
    %0 = vector.load %arg1[%c0, %c0_0] : memref<16x2048xf32, #tpu.memory_space<vmem>>, vector<16x2048xf32>
    %1 = vector.extract_strided_slice %0 {offsets = [0, 0], sizes = [16, 512], strides = [1, 1]} : vector<16x2048xf32> to vector<16x512xf32>
    %cst = arith.constant 0.000000e+00 : f32
    %2 = vector.broadcast %cst : f32 to vector<16x512xf32>
    %3 = arith.maximumf %1, %2 : vector<16x512xf32>
    %4 = vector.extract_strided_slice %0 {offsets = [0, 512], sizes = [16, 512], strides = [1, 1]} : vector<16x2048xf32> to vector<16x512xf32>
    %cst_1 = arith.constant 0.000000e+00 : f32
    %5 = vector.broadcast %cst_1 : f32 to vector<16x512xf32>
    %6 = arith.maximumf %4, %5 : vector<16x512xf32>
    %7 = arith.addf %3, %6 : vector<16x512xf32>
    %8 = vector.extract_strided_slice %0 {offsets = [0, 1024], sizes = [16, 512], strides = [1, 1]} : vector<16x2048xf32> to vector<16x512xf32>
    %cst_2 = arith.constant 0.000000e+00 : f32
    %9 = vector.broadcast %cst_2 : f32 to vector<16x512xf32>
    %10 = arith.maximumf %8, %9 : vector<16x512xf32>
    %11 = arith.addf %7, %10 : vector<16x512xf32>
    %12 = vector.extract_strided_slice %0 {offsets = [0, 1536], sizes = [16, 512], strides = [1, 1]} : vector<16x2048xf32> to vector<16x512xf32>
    %c0_3 = arith.constant 0 : index
    %c0_4 = arith.constant 0 : index
    %13 = vector.load %arg2[%c0_3, %c0_4] : memref<1x512xf32, #tpu.memory_space<vmem>>, vector<1x512xf32>
    %14 = vector.broadcast %13 : vector<1x512xf32> to vector<16x512xf32>
    %15 = arith.mulf %11, %14 : vector<16x512xf32>
    %c0_5 = arith.constant 0 : index
    %c0_6 = arith.constant 0 : index
    %16 = vector.load %arg3[%c0_5, %c0_6] : memref<1x512xf32, #tpu.memory_space<vmem>>, vector<1x512xf32>
    %17 = vector.broadcast %16 : vector<1x512xf32> to vector<16x512xf32>
    %18 = arith.addf %15, %17 : vector<16x512xf32>
    %19 = arith.addf %18, %12 : vector<16x512xf32>
    %cst_7 = arith.constant 0.000000e+00 : f32
    %20 = vector.broadcast %cst_7 : f32 to vector<16x512xf32>
    %21 = arith.maximumf %19, %20 : vector<16x512xf32>
    %c0_8 = arith.constant 0 : index
    %c0_9 = arith.constant 0 : index
    %22 = vector.load %arg4[%c0_8, %c0_9] : memref<16x512xf32, #tpu.memory_space<vmem>>, vector<16x512xf32>
    tpu.vector_store %arg4[%c0_8, %c0_9], %21 {strides = array<i32>} : memref<16x512xf32, #tpu.memory_space<vmem>>, vector<16x512xf32>,
    return
  }
  func.func @transform_0(%arg0: i32) -> (i32, i32) {
    %c0_i32 = arith.constant 0 : i32
    %c0_i32_0 = arith.constant 0 : i32
    return %arg0, %c0_i32 : i32, i32
  }
  func.func @transform_1(%arg0: i32) -> (i32, i32) {
    %c0_i32 = arith.constant 0 : i32
    %c0_i32_0 = arith.constant 0 : i32
    %c0_i32_1 = arith.constant 0 : i32
    return %c0_i32, %c0_i32_0 : i32, i32
  }
  func.func @transform_2(%arg0: i32) -> (i32, i32) {
    %c0_i32 = arith.constant 0 : i32
    %c0_i32_0 = arith.constant 0 : i32
    %c0_i32_1 = arith.constant 0 : i32
    return %c0_i32, %c0_i32_0 : i32, i32
  }
  func.func @transform_3(%arg0: i32) -> (i32, i32) {
    %c0_i32 = arith.constant 0 : i32
    %c0_i32_0 = arith.constant 0 : i32
    return %arg0, %c0_i32 : i32, i32
  }
}

</mosaic_0001>

<llo_original>
// kernel: tile.0
$region0: #{tile.0}
  %s0 = inlined_call_operand.vmem [shape: bf16[64,8], index: 0, kind: input, shape index: {}]
  %s1 = inlined_call_operand.vmem [shape: bf16[512], index: 1, kind: output, shape index: {}]
  $region1: #{tile.0} parent=0
    #allocation0 [shape = 'u8[4096]{0}', space=vmem, size = 0x1000, scoped, tag = 'scoped mem for output reshape']
    #allocation1 [shape = 'u8[32768]{0}', space=vmem, size = 0x8000, scoped, tag = 'scoped mem for input reshape']
    %s3 = smul.u32 4, 2
    %s4 = sshllo.u32 0, %s3
    %s5 = smul.addr 4, 7
    %s6 = scalar_lea.vmem %s0, %s5
    %s7 = sshrl.u32 %s4, 1
    %s8 = sor.u32 %s4, %s7
    %s9 = sand.u32 %s8, 85
    %s10 = sshrl.u32 %s9, 1
    %s11 = sor.u32 %s9, %s10
    %s12 = sand.u32 51, %s11
    %s13 = sshrl.u32 %s12, 2
    %s14 = sor.u32 %s12, %s13
    %s15 = sand.u32 15, %s14
    %v16 = vld [vmem:[%s6] sm:%s15]
    %v17 = vunpack.c.l.bf16 %v16
    %v18 = vunpack.c.h.bf16 %v16
    %s19 = scalar_lea.vmem [#allocation1], 56
    %20 = vst [vmem:[%s19] sm:%s4] %v17
    %s21 = smul.addr 4, 6
    %s22 = scalar_lea.vmem %s0, %s21
    %s23 = sshrl.u32 %s4, 1
    %s24 = sor.u32 %s4, %s23
    %s25 = sand.u32 %s24, 85
    %s26 = sshrl.u32 %s25, 1
    %s27 = sor.u32 %s25, %s26
    %s28 = sand.u32 51, %s27
    %s29 = sshrl.u32 %s28, 2
    %s30 = sor.u32 %s28, %s29
    %s31 = sand.u32 15, %s30
    %v32 = vld [vmem:[%s22] sm:%s31]
    %v33 = vunpack.c.l.bf16 %v32
    %v34 = vunpack.c.h.bf16 %v32
    %s35 = scalar_lea.vmem [#allocation1], 48
    %36 = vst [vmem:[%s35] sm:%s4] %v33
    %s37 = smul.addr 4, 5
    %s38 = scalar_lea.vmem %s0, %s37
    %s39 = sshrl.u32 %s4, 1
    %s40 = sor.u32 %s4, %s39
    %s41 = sand.u32 %s40, 85
    %s42 = sshrl.u32 %s41, 1
    %s43 = sor.u32 %s41, %s42
    %s44 = sand.u32 51, %s43
    %s45 = sshrl.u32 %s44, 2
    %s46 = sor.u32 %s44, %s45
    %s47 = sand.u32 15, %s46
    %v48 = vld [vmem:[%s38] sm:%s47]
    %v49 = vunpack.c.l.bf16 %v48
    %v50 = vunpack.c.h.bf16 %v48
    %s51 = scalar_lea.vmem [#allocation1], 40
    %52 = vst [vmem:[%s51] sm:%s4] %v49
    %s53 = smul.addr 4, 4
    %s54 = scalar_lea.vmem %s0, %s53
    %s55 = sshrl.u32 %s4, 1
    %s56 = sor.u32 %s4, %s55
    %s57 = sand.u32 %s56, 85
    %s58 = sshrl.u32 %s57, 1
    %s59 = sor.u32 %s57, %s58
    %s60 = sand.u32 51, %s59
    %s61 = sshrl.u32 %s60, 2
    %s62 = sor.u32 %s60, %s61
    %s63 = sand.u32 15, %s62
    %v64 = vld [vmem:[%s54] sm:%s63]
    %v65 = vunpack.c.l.bf16 %v64
    %v66 = vunpack.c.h.bf16 %v64
    %s67 = scalar_lea.vmem [#allocation1], 32
    %68 = vst [vmem:[%s67] sm:%s4] %v65
    %s69 = smul.addr 4, 3
    %s70 = scalar_lea.vmem %s0, %s69
    %s71 = sshrl.u32 %s4, 1
    %s72 = sor.u32 %s4, %s71
    %s73 = sand.u32 %s72, 85
    %s74 = sshrl.u32 %s73, 1
    %s75 = sor.u32 %s73, %s74
    %s76 = sand.u32 51, %s75
    %s77 = sshrl.u32 %s76, 2
    %s78 = sor.u32 %s76, %s77
    %s79 = sand.u32 15, %s78
    %v80 = vld [vmem:[%s70] sm:%s79]
    %v81 = vunpack.c.l.bf16 %v80
    %v82 = vunpack.c.h.bf16 %v80
    %s83 = scalar_lea.vmem [#allocation1], 24
    %84 = vst [vmem:[%s83] sm:%s4] %v81
    %s85 = smul.addr 4, 2
    %s86 = scalar_lea.vmem %s0, %s85
    %s87 = sshrl.u32 %s4, 1
    %s88 = sor.u32 %s4, %s87
    %s89 = sand.u32 %s88, 85
    %s90 = sshrl.u32 %s89, 1
    %s91 = sor.u32 %s89, %s90
    %s92 = sand.u32 51, %s91
    %s93 = sshrl.u32 %s92, 2
    %s94 = sor.u32 %s92, %s93
    %s95 = sand.u32 15, %s94
    %v96 = vld [vmem:[%s86] sm:%s95]
    %v97 = vunpack.c.l.bf16 %v96
    %v98 = vunpack.c.h.bf16 %v96
    %s99 = scalar_lea.vmem [#allocation1], 16
    %100 = vst [vmem:[%s99] sm:%s4] %v97
    %s101 = scalar_lea.vmem %s0, 4
    %s102 = sshrl.u32 %s4, 1
    %s103 = sor.u32 %s4, %s102
    %s104 = sand.u32 %s103, 85
    %s105 = sshrl.u32 %s104, 1
    %s106 = sor.u32 %s104, %s105
    %s107 = sand.u32 51, %s106
    %s108 = sshrl.u32 %s107, 2
    %s109 = sor.u32 %s107, %s108
    %s110 = sand.u32 15, %s109
    %v111 = vld [vmem:[%s101] sm:%s110]
    %v112 = vunpack.c.l.bf16 %v111
    %v113 = vunpack.c.h.bf16 %v111
    %s114 = scalar_lea.vmem [#allocation1], 8
    %115 = vst [vmem:[%s114] sm:%s4] %v112
    %s116 = sshrl.u32 %s4, 1
    %s117 = sor.u32 %s4, %s116
    %s118 = sand.u32 %s117, 85
    %s119 = sshrl.u32 %s118, 1
    %s120 = sor.u32 %s118, %s119
    %s121 = sand.u32 51, %s120
    %s122 = sshrl.u32 %s121, 2
    %s123 = sor.u32 %s121, %s122
    %s124 = sand.u32 15, %s123
    %v125 = vld [vmem:[%s0] sm:%s124]
    %v126 = vunpack.c.l.bf16 %v125
    %v127 = vunpack.c.h.bf16 %v125
    %128 = vst [vmem:[#allocation1] sm:%s4] %v126
    %s129 = smov 3
    %v130 = vld [vmem:[#allocation1] ss:$16 sm:%s129]
    %s131 = smov 12
    %v132 = vld [vmem:[#allocation1] ss:$16 sm:%s131]
    %vm133 = vcmask 1043458
    %v134 = vsel %vm133, %v132, %v130
    %vm135 = vcmask 64512
    %136 = vst.msk [vmem:[#allocation0] sm:$0xf] %vm135, %v134
    %s137 = scalar_lea.vmem [#allocation1], 15
    %s138 = smov 3
    %v139 = vld [vmem:[%s137] ss:$16 sm:%s138]
    %s140 = scalar_lea.vmem [#allocation1], 15
    %s141 = smov 12
    %v142 = vld [vmem:[%s140] ss:$16 sm:%s141]
    %vm143 = vcmask 1043458
    %v144 = vsel %vm143, %v142, %v139
    %145 = vrot.lane.b32.xlu0 %v144, 120
    %v146 = vpop.permute.xlu0 %145
    %vm147 = vcmask 1048512
    %148 = vst.msk [vmem:[#allocation0] sm:$0xf] %vm147, %v146
    %s149 = scalar_lea.vmem [#allocation1], 14
    %s150 = smov 3
    %v151 = vld [vmem:[%s149] ss:$16 sm:%s150]
    %s152 = scalar_lea.vmem [#allocation1], 14
    %s153 = smov 12
    %v154 = vld [vmem:[%s152] ss:$16 sm:%s153]
    %vm155 = vcmask 1043458
    %v156 = vsel %vm155, %v154, %v151
    %157 = vrot.lane.b32.xlu0 %v156, 112
    %v158 = vpop.permute.xlu0 %157
    %vm159 = vcmask 982912
    %160 = vst.msk [vmem:[#allocation0] sm:$0xf] %vm159, %v158
    %s161 = scalar_lea.vmem [#allocation1], 13
    %s162 = smov 3
    %v163 = vld [vmem:[%s161] ss:$16 sm:%s162]
    %s164 = scalar_lea.vmem [#allocation1], 13
    %s165 = smov 12
    %v166 = vld [vmem:[%s164] ss:$16 sm:%s165]
    %vm167 = vcmask 1043458
    %v168 = vsel %vm167, %v166, %v163
    %169 = vrot.lane.b32.xlu0 %v168, 104
    %v170 = vpop.permute.xlu0 %169
    %vm171 = vcmask 917312
    %172 = vst.msk [vmem:[#allocation0] sm:$0xf] %vm171, %v170
    %s173 = scalar_lea.vmem [#allocation1], 12
    %s174 = smov 3
    %v175 = vld [vmem:[%s173] ss:$16 sm:%s174]
    %s176 = scalar_lea.vmem [#allocation1], 12
    %s177 = smov 12
    %v178 = vld [vmem:[%s176] ss:$16 sm:%s177]
    %vm179 = vcmask 1043458
    %v180 = vsel %vm179, %v178, %v175
    %181 = vrot.lane.b32.xlu0 %v180, 96
    %v182 = vpop.permute.xlu0 %181
    %vm183 = vcmask 851712
    %184 = vst.msk [vmem:[#allocation0] sm:$0xf] %vm183, %v182
    %s185 = scalar_lea.vmem [#allocation1], 11
    %s186 = smov 3
    %v187 = vld [vmem:[%s185] ss:$16 sm:%s186]
    %s188 = scalar_lea.vmem [#allocation1], 11
    %s189 = smov 12
    %v190 = vld [vmem:[%s188] ss:$16 sm:%s189]
    %vm191 = vcmask 1043458
    %v192 = vsel %vm191, %v190, %v187
    %193 = vrot.lane.b32.xlu0 %v192, 88
    %v194 = vpop.permute.xlu0 %193
    %vm195 = vcmask 786112
    %196 = vst.msk [vmem:[#allocation0] sm:$0xf] %vm195, %v194
    %s197 = scalar_lea.vmem [#allocation1], 10
    %s198 = smov 3
    %v199 = vld [vmem:[%s197] ss:$16 sm:%s198]
    %s200 = scalar_lea.vmem [#allocation1], 10
    %s201 = smov 12
    %v202 = vld [vmem:[%s200] ss:$16 sm:%s201]
    %vm203 = vcmask 1043458
    %v204 = vsel %vm203, %v202, %v199
    %205 = vrot.lane.b32.xlu0 %v204, 80
    %v206 = vpop.permute.xlu0 %205
    %vm207 = vcmask 720512
    %208 = vst.msk [vmem:[#allocation0] sm:$0xf] %vm207, %v206
    %s209 = scalar_lea.vmem [#allocation1], 9
    %s210 = smov 3
    %v211 = vld [vmem:[%s209] ss:$16 sm:%s210]
    %s212 = scalar_lea.vmem [#allocation1], 9
    %s213 = smov 12
    %v214 = vld [vmem:[%s212] ss:$16 sm:%s213]
    %vm215 = vcmask 1043458
    %v216 = vsel %vm215, %v214, %v211
    %217 = vrot.lane.b32.xlu0 %v216, 72
    %v218 = vpop.permute.xlu0 %217
    %vm219 = vcmask 654912
    %220 = vst.msk [vmem:[#allocation0] sm:$0xf] %vm219, %v218
    %s221 = scalar_lea.vmem [#allocation1], 8
    %s222 = smov 3
    %v223 = vld [vmem:[%s221] ss:$16 sm:%s222]
    %s224 = scalar_lea.vmem [#allocation1], 8
    %s225 = smov 12
    %v226 = vld [vmem:[%s224] ss:$16 sm:%s225]
    %vm227 = vcmask 1043458
    %v228 = vsel %vm227, %v226, %v223
    %229 = vrot.lane.b32.xlu0 %v228, 64
    %v230 = vpop.permute.xlu0 %229
    %vm231 = vcmask 589312
    %232 = vst.msk [vmem:[#allocation0] sm:$0xf] %vm231, %v230
    %s233 = scalar_lea.vmem [#allocation1], 7
    %s234 = smov 3
    %v235 = vld [vmem:[%s233] ss:$16 sm:%s234]
    %s236 = scalar_lea.vmem [#allocation1], 7
    %s237 = smov 12
    %v238 = vld [vmem:[%s236] ss:$16 sm:%s237]
    %vm239 = vcmask 1043458
    %v240 = vsel %vm239, %v238, %v235
    %241 = vrot.lane.b32.xlu0 %v240, 56
    %v242 = vpop.permute.xlu0 %241
    %vm243 = vcmask 523712
    %244 = vst.msk [vmem:[#allocation0] sm:$0xf] %vm243, %v242
    %s245 = scalar_lea.vmem [#allocation1], 6
    %s246 = smov 3
    %v247 = vld [vmem:[%s245] ss:$16 sm:%s246]
    %s248 = scalar_lea.vmem [#allocation1], 6
    %s249 = smov 12
    %v250 = vld [vmem:[%s248] ss:$16 sm:%s249]
    %vm251 = vcmask 1043458
    %v252 = vsel %vm251, %v250, %v247
    %253 = vrot.lane.b32.xlu0 %v252, 48
    %v254 = vpop.permute.xlu0 %253
    %vm255 = vcmask 458112
    %256 = vst.msk [vmem:[#allocation0] sm:$0xf] %vm255, %v254
    %s257 = scalar_lea.vmem [#allocation1], 5
    %s258 = smov 3
    %v259 = vld [vmem:[%s257] ss:$16 sm:%s258]
    %s260 = scalar_lea.vmem [#allocation1], 5
    %s261 = smov 12
    %v262 = vld [vmem:[%s260] ss:$16 sm:%s261]
    %vm263 = vcmask 1043458
    %v264 = vsel %vm263, %v262, %v259
    %265 = vrot.lane.b32.xlu0 %v264, 40
    %v266 = vpop.permute.xlu0 %265
    %vm267 = vcmask 392512
    %268 = vst.msk [vmem:[#allocation0] sm:$0xf] %vm267, %v266
    %s269 = scalar_lea.vmem [#allocation1], 4
    %s270 = smov 3
    %v271 = vld [vmem:[%s269] ss:$16 sm:%s270]
    %s272 = scalar_lea.vmem [#allocation1], 4
    %s273 = smov 12
    %v274 = vld [vmem:[%s272] ss:$16 sm:%s273]
    %vm275 = vcmask 1043458
    %v276 = vsel %vm275, %v274, %v271
    %277 = vrot.lane.b32.xlu0 %v276, 32
    %v278 = vpop.permute.xlu0 %277
    %vm279 = vcmask 326912
    %280 = vst.msk [vmem:[#allocation0] sm:$0xf] %vm279, %v278
    %s281 = scalar_lea.vmem [#allocation1], 3
    %s282 = smov 3
    %v283 = vld [vmem:[%s281] ss:$16 sm:%s282]
    %s284 = scalar_lea.vmem [#allocation1], 3
    %s285 = smov 12
    %v286 = vld [vmem:[%s284] ss:$16 sm:%s285]
    %vm287 = vcmask 1043458
    %v288 = vsel %vm287, %v286, %v283
    %289 = vrot.lane.b32.xlu0 %v288, 24
    %v290 = vpop.permute.xlu0 %289
    %vm291 = vcmask 261312
    %292 = vst.msk [vmem:[#allocation0] sm:$0xf] %vm291, %v290
    %s293 = scalar_lea.vmem [#allocation1], 2
    %s294 = smov 3
    %v295 = vld [vmem:[%s293] ss:$16 sm:%s294]
    %s296 = scalar_lea.vmem [#allocation1], 2
    %s297 = smov 12
    %v298 = vld [vmem:[%s296] ss:$16 sm:%s297]
    %vm299 = vcmask 1043458
    %v300 = vsel %vm299, %v298, %v295
    %301 = vrot.lane.b32.xlu0 %v300, 16
    %v302 = vpop.permute.xlu0 %301
    %vm303 = vcmask 195712
    %304 = vst.msk [vmem:[#allocation0] sm:$0xf] %vm303, %v302
    %s305 = scalar_lea.vmem [#allocation1], 1
    %s306 = smov 3
    %v307 = vld [vmem:[%s305] ss:$16 sm:%s306]
    %s308 = scalar_lea.vmem [#allocation1], 1
    %s309 = smov 12
    %v310 = vld [vmem:[%s308] ss:$16 sm:%s309]
    %vm311 = vcmask 1043458
    %v312 = vsel %vm311, %v310, %v307
    %313 = vrot.lane.b32.xlu0 %v312, 8
    %v314 = vpop.permute.xlu0 %313
    %vm315 = vcmask 130112
    %316 = vst.msk [vmem:[#allocation0] sm:$0xf] %vm315, %v314
    %s318 = smul.u32 2, 2
    %s319 = sshllo.u32 0, %s318
    %s320 = sshrl.u32 %s318, 1
    %v321 = vld [vmem:[#allocation0] sm:%s319]
    %v322 = vpack.c.bf16 0.0, %v321
    %s323 = sshllo.u32 0, %s320
    %324 = vst [vmem:[%s1] sm:%s323] %v322

// kernel: vertical_inception_forward.3
$region0: #{vertical_inception_forward.3}
  #allocation0 [shape = 'u32[]', space=smem, size = 0x4, offset = 0x4, fixed_abs, tag = 'smem constant byte address 0x4 - core index']
  #allocation1 [shape = 'u32[144,128]{1,0:T(1,128)}', space=vmem, size = 0x12000, scoped, tag = 'internal scratch']
  #allocation2 [shape = 'f32[16,256]{1,0:T(8,128)}', space=vmem, size = 0x4000, scoped, tag = 'scratch operand']
  %s0 = inlined_call_operand.vmem [shape: bf16[16,1024], index: 0, kind: input, shape index: {}]
  %s1 = inlined_call_operand.vmem [shape: bf16[1024,2048], index: 1, kind: input, shape index: {}]
  %s2 = inlined_call_operand.vmem [shape: f32[16,2048], index: 2, kind: output, shape index: {}]
  %s3 = sld [smem:[#allocation0]]
  $region129: #{vertical_inception_forward.3} parent=0
    _
  %s5 = ssub.s32 1, %s3
  %s6 = scalar_select 0, %s5, %s3
  $region1: #{vertical_inception_forward.3} parent=0
    #allocation3 [shape = 'u8[32768]{0}', space=vmem, size = 0x8000, scoped, tag = 'input window, operand 0']
    #allocation4 [shape = 'u8[524288]{0}', space=vmem, size = 0x80000, scoped, tag = 'input window, operand 1']
    #allocation5 [shape = 'u8[32768]{0}', space=vmem, size = 0x8000, scoped, tag = 'output window, operand 0']
    loop: start=0, step=1, limit=18
    $region2: #{vertical_inception_forward.3} parent=1 // loop_pre_header
      _
    $region3: #{vertical_inception_forward.3} parent=1 // loop_header
      %s8 = sphi 0, %s12
      %p9 = scmp.ge.s32.totalorder %s8, 18
      %s15 = sphi 0, %s34
      %s16 = sphi 0, %s30
      %s17 = sphi 0, %s26
      %s18 = sphi 0, %s15
      %s19 = sphi 0, %s16
      %s20 = sphi 0, %s17
      %s21 = sphi 0, %s18
      %s22 = sphi 0, %s19
      %s23 = sphi 0, %s20
      %s39 = sphi 0, %s41
      %s42 = sphi 0, %s39
      %s43 = sphi 0, %s42
      %s59 = sphi 0, %s43
      %s67 = sphi 0, %s69
      %s70 = sphi 0, %s67
      %s71 = sphi 0, %s70
      %s87 = sphi 0, %s71
      %s95 = sphi 0, %s97
      %s98 = sphi 0, %s95
      %s99 = sphi 0, %s98
      %s115 = sphi 0, %s99
    $region4: #{vertical_inception_forward.3} parent=1 // loop_header_branch
      %11 = sbr.rel (%p9) target = $region8
    $region5: #{vertical_inception_forward.3} parent=1 // loop_body
      %s13 = ssub.s32 %s8, 1
      %s14 = ssub.s32 %s8, 2
      %s24 = sadd.s32 1, %s17
      %p25 = scmp.ge.s32.totalorder %s24, 2
      %s26 = scalar_select %p25, 0, %s24
      %s27 = sadd.s32 1, %s16
      %s28 = scalar_select %p25, %s27, %s16
      %p29 = scmp.ge.s32.totalorder %s28, 8
      %s30 = scalar_select %p29, 0, %s28
      %s31 = sadd.s32 1, %s15
      %s32 = scalar_select %p29, %s31, %s15
      %p33 = scmp.ge.s32.totalorder %s32, 1
      %s34 = scalar_select %p33, 0, %s32
      %s35 = ssub.s32 %s15, %s34
      %s36 = ssub.s32 %s17, %s26
      %s37 = sor.u32 %s35, %s36
      %p38 = scmp.eq.s32.totalorder %s37, 0
      %s40 = sadd.s32 %s39, 1
      %s41 = scalar_select %p38, %s39, %s40
      %p44 = pneg %p38
      %p45 = scmp.eq.s32.totalorder %s8, 15
      %p46 = por %p44, %p45
      %p47 = scmp.ne.s32.totalorder %s39, %s42
      %p48 = scmp.eq.s32.totalorder %s8, 0
      %p49 = por %p47, %p48
      %p50 = scmp.ne.s32.totalorder %s39, %s42
      %p51 = scmp.eq.s32.totalorder %s13, 15
      %p52 = por %p50, %p51
      %p53 = scmp.ne.s32.totalorder %s42, %s43
      %p54 = scmp.eq.s32.totalorder %s13, 0
      %p55 = por %p53, %p54
      %p56 = scmp.ne.s32.totalorder %s42, %s43
      %p57 = scmp.eq.s32.totalorder %s14, 15
      %p58 = por %p56, %p57
      %p60 = scmp.ne.s32.totalorder %s43, %s59
      %p61 = scmp.eq.s32.totalorder %s14, 0
      %p62 = por %p60, %p61
      %s63 = ssub.s32 %s17, %s26
      %s64 = ssub.s32 %s16, %s30
      %s65 = sor.u32 %s63, %s64
      %p66 = scmp.eq.s32.totalorder %s65, 0
      %s68 = sadd.s32 %s67, 1
      %s69 = scalar_select %p66, %s67, %s68
      %p72 = pneg %p66
      %p73 = scmp.eq.s32.totalorder %s8, 15
      %p74 = por %p72, %p73
      %p75 = scmp.ne.s32.totalorder %s67, %s70
      %p76 = scmp.eq.s32.totalorder %s8, 0
      %p77 = por %p75, %p76
      %p78 = scmp.ne.s32.totalorder %s67, %s70
      %p79 = scmp.eq.s32.totalorder %s13, 15
      %p80 = por %p78, %p79
      %p81 = scmp.ne.s32.totalorder %s70, %s71
      %p82 = scmp.eq.s32.totalorder %s13, 0
      %p83 = por %p81, %p82
      %p84 = scmp.ne.s32.totalorder %s70, %s71
      %p85 = scmp.eq.s32.totalorder %s14, 15
      %p86 = por %p84, %p85
      %p88 = scmp.ne.s32.totalorder %s71, %s87
      %p89 = scmp.eq.s32.totalorder %s14, 0
      %p90 = por %p88, %p89
      %s91 = ssub.s32 %s15, %s34
      %s92 = ssub.s32 %s16, %s30
      %s93 = sor.u32 %s91, %s92
      %p94 = scmp.eq.s32.totalorder %s93, 0
      %s96 = sadd.s32 %s95, 1
      %s97 = scalar_select %p94, %s95, %s96
      %p100 = pneg %p94
      %p101 = scmp.eq.s32.totalorder %s8, 15
      %p102 = por %p100, %p101
      %p103 = scmp.ne.s32.totalorder %s95, %s98
      %p104 = scmp.eq.s32.totalorder %s8, 0
      %p105 = por %p103, %p104
      %p106 = scmp.ne.s32.totalorder %s95, %s98
      %p107 = scmp.eq.s32.totalorder %s13, 15
      %p108 = por %p106, %p107
      %p109 = scmp.ne.s32.totalorder %s98, %s99
      %p110 = scmp.eq.s32.totalorder %s13, 0
      %p111 = por %p109, %p110
      %p112 = scmp.ne.s32.totalorder %s98, %s99
      %p113 = scmp.eq.s32.totalorder %s14, 15
      %p114 = por %p112, %p113
      %p116 = scmp.ne.s32.totalorder %s99, %s115
      %p117 = scmp.eq.s32.totalorder %s14, 0
      %p118 = por %p116, %p117
      %p119 = scmp.le.s32.totalorder 1, %s8
      %p120 = scmp.lt.s32.totalorder %s8, 17
      %p121 = pnand %p119, %p120
      %p122 = pneg %p121
      // Predicated region
      $region9: #{vertical_inception_forward.3} parent=5 // pred_check
        _
      $region10: #{vertical_inception_forward.3} parent=5 // pred_check_branch
        %124 = sbr.rel (%p121) target = $region12
      $region11: #{vertical_inception_forward.3} parent=5 // pred_region
        %s125 = ssub.s32 %s8, 1
      $region12: #{vertical_inception_forward.3} parent=5 // pred_fallthru
        _
      %p126 = scmp.lt.s32.totalorder %s8, 16
      // Predicated region
      $region13: #{vertical_inception_forward.3} parent=5 // pred_check
        %p127 = pneg %p126
      $region14: #{vertical_inception_forward.3} parent=5 // pred_check_branch
        %129 = sbr.rel (%p127) target = $region16
      $region15: #{vertical_inception_forward.3} parent=5 // pred_region
        // Predicated region
        $region17: #{vertical_inception_forward.3} parent=15 // pred_check
          %p130 = pneg %p49
        $region18: #{vertical_inception_forward.3} parent=15 // pred_check_branch
          %132 = sbr.rel (%p130) target = $region20
        $region19: #{vertical_inception_forward.3} parent=15 // pred_region
          %s133 = sand.u32 %s39, 1
          %s134 = sand.u32 %s39, 1
          %s135 = smul.addr %s134, 32
          %s136 = scalar_lea.vmem [#allocation3], %s135
          %s137 = smul.u32 2, %s15
          %s138 = smul.u32 4, %s17
          %s139 = smul.addr %s137, 8
          %s140 = sadd.s32 %s138, %s139
          %s141 = smul.addr %s140, 4
          %s142 = scalar_lea.vmem %s0, %s141
          // Predicated region
          $region21: #{vertical_inception_forward.3} parent=19 // pred_check
            _
          $region22: #{vertical_inception_forward.3} parent=19 // pred_check_branch
            %144 = sbr.rel (0) target = $region24
          $region23: #{vertical_inception_forward.3} parent=19 // pred_region
            // Predicated region
            $region25: #{vertical_inception_forward.3} parent=23 // pred_check
              _
            $region26: #{vertical_inception_forward.3} parent=23 // pred_check_branch
              %146 = sbr.rel (0) target = $region28
            $region27: #{vertical_inception_forward.3} parent=23 // pred_region
              loop: start=0, step=1, limit=1
              $region29: #{vertical_inception_forward.3} parent=27 // loop_pre_header
                _
              $region30: #{vertical_inception_forward.3} parent=27 // loop_header
                %s148 = sphi 0, %s152
                %p149 = scmp.ge.s32.totalorder %s148, 1
                %s153 = sphi %s142, %s142
                %s154 = sphi %s136, %s136
              $region31: #{vertical_inception_forward.3} parent=27 // loop_header_branch
                %151 = sbr.rel (%p149) target = $region35
              $region32: #{vertical_inception_forward.3} parent=27 // loop_body
                %v155 = vld [vmem:[%s153] sm:$0xff]
                %156 = vst [vmem:[%s154] sm:$0xff] %v155
                %v157 = vld [vmem:[%s153 + $0x8] sm:$0xff]
                %158 = vst [vmem:[%s154 + $0x8] sm:$0xff] %v157
                %v159 = vld [vmem:[%s153 + $0x20] sm:$0xff]
                %160 = vst [vmem:[%s154 + $0x10] sm:$0xff] %v159
                %v161 = vld [vmem:[%s153 + $0x28] sm:$0xff]
                %162 = vst [vmem:[%s154 + $0x18] sm:$0xff] %v161
              $region33: #{vertical_inception_forward.3} parent=27 // loop_footer
                %s152 = sadd.s32 1, %s148
              $region34: #{vertical_inception_forward.3} parent=27 // loop_footer_branch
                %147 = sbr.rel target = $region30
              $region35: #{vertical_inception_forward.3} parent=27 // loop_exit
                _
            $region28: #{vertical_inception_forward.3} parent=23 // pred_fallthru
              _
            // Predicated region
            $region36: #{vertical_inception_forward.3} parent=23 // pred_check
              _
            $region37: #{vertical_inception_forward.3} parent=23 // pred_check_branch
              %164 = sbr.rel target = $region39
            $region38: #{vertical_inception_forward.3} parent=23 // pred_region
              _
            $region39: #{vertical_inception_forward.3} parent=23 // pred_fallthru
              _
          $region24: #{vertical_inception_forward.3} parent=19 // pred_fallthru
            _
          %165 = vnop
        $region20: #{vertical_inception_forward.3} parent=15 // pred_fallthru
          _
        // Predicated region
        $region40: #{vertical_inception_forward.3} parent=15 // pred_check
          %p166 = pneg %p77
        $region41: #{vertical_inception_forward.3} parent=15 // pred_check_branch
          %168 = sbr.rel (%p166) target = $region43
        $region42: #{vertical_inception_forward.3} parent=15 // pred_region
          %s169 = sand.u32 %s67, 1
          %s170 = sand.u32 %s67, 1
          %s171 = smul.addr %s170, 512
          %s172 = scalar_lea.vmem [#allocation4], %s171
          %s173 = smul.u32 64, %s17
          %s174 = smul.u32 2, %s16
          %s175 = smul.addr %s173, 16
          %s176 = sadd.s32 %s174, %s175
          %s177 = smul.addr %s176, 4
          %s178 = scalar_lea.vmem %s1, %s177
          // Predicated region
          $region44: #{vertical_inception_forward.3} parent=42 // pred_check
            _
          $region45: #{vertical_inception_forward.3} parent=42 // pred_check_branch
            %180 = sbr.rel (0) target = $region47
          $region46: #{vertical_inception_forward.3} parent=42 // pred_region
            // Predicated region
            $region48: #{vertical_inception_forward.3} parent=46 // pred_check
              _
            $region49: #{vertical_inception_forward.3} parent=46 // pred_check_branch
              %182 = sbr.rel (0) target = $region51
            $region50: #{vertical_inception_forward.3} parent=46 // pred_region
              // Predicated region
              $region63: #{vertical_inception_forward.3} parent=50 // pred_check
                _
              $region64: #{vertical_inception_forward.3} parent=50 // pred_check_branch
                %323 = sbr.rel (0) target = $region66
              $region65: #{vertical_inception_forward.3} parent=50 // pred_region
                loop: start=0, step=1, limit=1
                $region67: #{vertical_inception_forward.3} parent=65 // loop_pre_header
                  _
                $region68: #{vertical_inception_forward.3} parent=65 // loop_header
                  %s325 = sphi 0, %s329
                  %p326 = scmp.ge.s32.totalorder %s325, 1
                  %s330 = sphi %s178, %s178
                  %s331 = sphi %s172, %s172
                $region69: #{vertical_inception_forward.3} parent=65 // loop_header_branch
                  %328 = sbr.rel (%p326) target = $region73
                $region70: #{vertical_inception_forward.3} parent=65 // loop_body
                  %v332 = vld [vmem:[%s330] sm:$0xff]
                  %333 = vst [vmem:[%s331] sm:$0xff] %v332
                  %v334 = vld [vmem:[%s330 + $0x40] sm:$0xff]
                  %335 = vst [vmem:[%s331 + $0x8] sm:$0xff] %v334
                  %v336 = vld [vmem:[%s330 + $0x80] sm:$0xff]
                  %337 = vst [vmem:[%s331 + $0x10] sm:$0xff] %v336
                  %v338 = vld [vmem:[%s330 + $0xc0] sm:$0xff]
                  %339 = vst [vmem:[%s331 + $0x18] sm:$0xff] %v338
                  %v340 = vld [vmem:[%s330 + $0x100] sm:$0xff]
                  %341 = vst [vmem:[%s331 + $0x20] sm:$0xff] %v340
                  %v342 = vld [vmem:[%s330 + $0x140] sm:$0xff]
                  %343 = vst [vmem:[%s331 + $0x28] sm:$0xff] %v342
                  %v344 = vld [vmem:[%s330 + $0x180] sm:$0xff]
                  %345 = vst [vmem:[%s331 + $0x30] sm:$0xff] %v344
                  %v346 = vld [vmem:[%s330 + $0x1c0] sm:$0xff]
                  %347 = vst [vmem:[%s331 + $0x38] sm:$0xff] %v346
                  %v348 = vld [vmem:[%s330 + $0x200] sm:$0xff]
                  %349 = vst [vmem:[%s331 + $0x40] sm:$0xff] %v348
                  %v350 = vld [vmem:[%s330 + $0x240] sm:$0xff]
                  %351 = vst [vmem:[%s331 + $0x48] sm:$0xff] %v350
                  %v352 = vld [vmem:[%s330 + $0x280] sm:$0xff]
                  %353 = vst [vmem:[%s331 + $0x50] sm:$0xff] %v352
                  %v354 = vld [vmem:[%s330 + $0x2c0] sm:$0xff]
                  %355 = vst [vmem:[%s331 + $0x58] sm:$0xff] %v354
                  %v356 = vld [vmem:[%s330 + $0x300] sm:$0xff]
                  %357 = vst [vmem:[%s331 + $0x60] sm:$0xff] %v356
                  %v358 = vld [vmem:[%s330 + $0x340] sm:$0xff]
                  %359 = vst [vmem:[%s331 + $0x68] sm:$0xff] %v358
                  %v360 = vld [vmem:[%s330 + $0x380] sm:$0xff]
                  %361 = vst [vmem:[%s331 + $0x70] sm:$0xff] %v360
                  %v362 = vld [vmem:[%s330 + $0x3c0] sm:$0xff]
                  %363 = vst [vmem:[%s331 + $0x78] sm:$0xff] %v362
                  %v364 = vld [vmem:[%s330 + $0x400] sm:$0xff]
                  %365 = vst [vmem:[%s331 + $0x80] sm:$0xff] %v364
                  %v366 = vld [vmem:[%s330 + $0x440] sm:$0xff]
                  %367 = vst [vmem:[%s331 + $0x88] sm:$0xff] %v366
                  %v368 = vld [vmem:[%s330 + $0x480] sm:$0xff]
                  %369 = vst [vmem:[%s331 + $0x90] sm:$0xff] %v368
                  %v370 = vld [vmem:[%s330 + $0x4c0] sm:$0xff]
                  %371 = vst [vmem:[%s331 + $0x98] sm:$0xff] %v370
                  %v372 = vld [vmem:[%s330 + $0x500] sm:$0xff]
                  %373 = vst [vmem:[%s331 + $0xa0] sm:$0xff] %v372
                  %v374 = vld [vmem:[%s330 + $0x540] sm:$0xff]
                  %375 = vst [vmem:[%s331 + $0xa8] sm:$0xff] %v374
                  %v376 = vld [vmem:[%s330 + $0x580] sm:$0xff]
                  %377 = vst [vmem:[%s331 + $0xb0] sm:$0xff] %v376
                  %v378 = vld [vmem:[%s330 + $0x5c0] sm:$0xff]
                  %379 = vst [vmem:[%s331 + $0xb8] sm:$0xff] %v378
                  %v380 = vld [vmem:[%s330 + $0x600] sm:$0xff]
                  %381 = vst [vmem:[%s331 + $0xc0] sm:$0xff] %v380
                  %v382 = vld [vmem:[%s330 + $0x640] sm:$0xff]
                  %383 = vst [vmem:[%s331 + $0xc8] sm:$0xff] %v382
                  %v384 = vld [vmem:[%s330 + $0x680] sm:$0xff]
                  %385 = vst [vmem:[%s331 + $0xd0] sm:$0xff] %v384
                  %v386 = vld [vmem:[%s330 + $0x6c0] sm:$0xff]
                  %387 = vst [vmem:[%s331 + $0xd8] sm:$0xff] %v386
                  %v388 = vld [vmem:[%s330 + $0x700] sm:$0xff]
                  %389 = vst [vmem:[%s331 + $0xe0] sm:$0xff] %v388
                  %v390 = vld [vmem:[%s330 + $0x740] sm:$0xff]
                  %391 = vst [vmem:[%s331 + $0xe8] sm:$0xff] %v390
                  %v392 = vld [vmem:[%s330 + $0x780] sm:$0xff]
                  %393 = vst [vmem:[%s331 + $0xf0] sm:$0xff] %v392
                  %v394 = vld [vmem:[%s330 + $0x7c0] sm:$0xff]
                  %395 = vst [vmem:[%s331 + $0xf8] sm:$0xff] %v394
                  %v396 = vld [vmem:[%s330 + $0x800] sm:$0xff]
                  %397 = vst [vmem:[%s331 + $0x100] sm:$0xff] %v396
                  %v398 = vld [vmem:[%s330 + $0x840] sm:$0xff]
                  %399 = vst [vmem:[%s331 + $0x108] sm:$0xff] %v398
                  %v400 = vld [vmem:[%s330 + $0x880] sm:$0xff]
                  %401 = vst [vmem:[%s331 + $0x110] sm:$0xff] %v400
                  %v402 = vld [vmem:[%s330 + $0x8c0] sm:$0xff]
                  %403 = vst [vmem:[%s331 + $0x118] sm:$0xff] %v402
                  %v404 = vld [vmem:[%s330 + $0x900] sm:$0xff]
                  %405 = vst [vmem:[%s331 + $0x120] sm:$0xff] %v404
                  %v406 = vld [vmem:[%s330 + $0x940] sm:$0xff]
                  %407 = vst [vmem:[%s331 + $0x128] sm:$0xff] %v406
                  %v408 = vld [vmem:[%s330 + $0x980] sm:$0xff]
                  %409 = vst [vmem:[%s331 + $0x130] sm:$0xff] %v408
                  %v410 = vld [vmem:[%s330 + $0x9c0] sm:$0xff]
                  %411 = vst [vmem:[%s331 + $0x138] sm:$0xff] %v410
                  %v412 = vld [vmem:[%s330 + $0xa00] sm:$0xff]
                  %413 = vst [vmem:[%s331 + $0x140] sm:$0xff] %v412
                  %v414 = vld [vmem:[%s330 + $0xa40] sm:$0xff]
                  %415 = vst [vmem:[%s331 + $0x148] sm:$0xff] %v414
                  %v416 = vld [vmem:[%s330 + $0xa80] sm:$0xff]
                  %417 = vst [vmem:[%s331 + $0x150] sm:$0xff] %v416
                  %v418 = vld [vmem:[%s330 + $0xac0] sm:$0xff]
                  %419 = vst [vmem:[%s331 + $0x158] sm:$0xff] %v418
                  %v420 = vld [vmem:[%s330 + $0xb00] sm:$0xff]
                  %421 = vst [vmem:[%s331 + $0x160] sm:$0xff] %v420
                  %v422 = vld [vmem:[%s330 + $0xb40] sm:$0xff]
                  %423 = vst [vmem:[%s331 + $0x168] sm:$0xff] %v422
                  %v424 = vld [vmem:[%s330 + $0xb80] sm:$0xff]
                  %425 = vst [vmem:[%s331 + $0x170] sm:$0xff] %v424
                  %v426 = vld [vmem:[%s330 + $0xbc0] sm:$0xff]
                  %427 = vst [vmem:[%s331 + $0x178] sm:$0xff] %v426
                  %v428 = vld [vmem:[%s330 + $0xc00] sm:$0xff]
                  %429 = vst [vmem:[%s331 + $0x180] sm:$0xff] %v428
                  %v430 = vld [vmem:[%s330 + $0xc40] sm:$0xff]
                  %431 = vst [vmem:[%s331 + $0x188] sm:$0xff] %v430
                  %v432 = vld [vmem:[%s330 + $0xc80] sm:$0xff]
                  %433 = vst [vmem:[%s331 + $0x190] sm:$0xff] %v432
                  %v434 = vld [vmem:[%s330 + $0xcc0] sm:$0xff]
                  %435 = vst [vmem:[%s331 + $0x198] sm:$0xff] %v434
                  %v436 = vld [vmem:[%s330 + $0xd00] sm:$0xff]
                  %437 = vst [vmem:[%s331 + $0x1a0] sm:$0xff] %v436
                  %v438 = vld [vmem:[%s330 + $0xd40] sm:$0xff]
                  %439 = vst [vmem:[%s331 + $0x1a8] sm:$0xff] %v438
                  %v440 = vld [vmem:[%s330 + $0xd80] sm:$0xff]
                  %441 = vst [vmem:[%s331 + $0x1b0] sm:$0xff] %v440
                  %v442 = vld [vmem:[%s330 + $0xdc0] sm:$0xff]
                  %443 = vst [vmem:[%s331 + $0x1b8] sm:$0xff] %v442
                  %v444 = vld [vmem:[%s330 + $0xe00] sm:$0xff]
                  %445 = vst [vmem:[%s331 + $0x1c0] sm:$0xff] %v444
                  %v446 = vld [vmem:[%s330 + $0xe40] sm:$0xff]
                  %447 = vst [vmem:[%s331 + $0x1c8] sm:$0xff] %v446
                  %v448 = vld [vmem:[%s330 + $0xe80] sm:$0xff]
                  %449 = vst [vmem:[%s331 + $0x1d0] sm:$0xff] %v448
                  %v450 = vld [vmem:[%s330 + $0xec0] sm:$0xff]
                  %451 = vst [vmem:[%s331 + $0x1d8] sm:$0xff] %v450
                  %v452 = vld [vmem:[%s330 + $0xf00] sm:$0xff]
                  %453 = vst [vmem:[%s331 + $0x1e0] sm:$0xff] %v452
                  %v454 = vld [vmem:[%s330 + $0xf40] sm:$0xff]
                  %455 = vst [vmem:[%s331 + $0x1e8] sm:$0xff] %v454
                  %v456 = vld [vmem:[%s330 + $0xf80] sm:$0xff]
                  %457 = vst [vmem:[%s331 + $0x1f0] sm:$0xff] %v456
                  %v458 = vld [vmem:[%s330 + $0xfc0] sm:$0xff]
                  %459 = vst [vmem:[%s331 + $0x1f8] sm:$0xff] %v458
                $region71: #{vertical_inception_forward.3} parent=65 // loop_footer
                  %s329 = sadd.s32 1, %s325
                $region72: #{vertical_inception_forward.3} parent=65 // loop_footer_branch
                  %324 = sbr.rel target = $region68
                $region73: #{vertical_inception_forward.3} parent=65 // loop_exit
                  _
              $region66: #{vertical_inception_forward.3} parent=50 // pred_fallthru
                _
              // Predicated region
              $region74: #{vertical_inception_forward.3} parent=50 // pred_check
                _
              $region75: #{vertical_inception_forward.3} parent=50 // pred_check_branch
                %461 = sbr.rel target = $region77
              $region76: #{vertical_inception_forward.3} parent=50 // pred_region
                _
              $region77: #{vertical_inception_forward.3} parent=50 // pred_fallthru
                _
            $region51: #{vertical_inception_forward.3} parent=46 // pred_fallthru
              _
            // Predicated region
            $region52: #{vertical_inception_forward.3} parent=46 // pred_check
              _
            $region53: #{vertical_inception_forward.3} parent=46 // pred_check_branch
              %184 = sbr.rel target = $region55
            $region54: #{vertical_inception_forward.3} parent=46 // pred_region
              loop: start=0, step=1, limit=1
              $region56: #{vertical_inception_forward.3} parent=54 // loop_pre_header
                _
              $region57: #{vertical_inception_forward.3} parent=54 // loop_header
                %s187 = sphi 0, %s191
                %p188 = scmp.ge.s32.totalorder %s187, 1
                %s192 = sphi %s178, %s178
                %s193 = sphi %s172, %s172
              $region58: #{vertical_inception_forward.3} parent=54 // loop_header_branch
                %190 = sbr.rel (%p188) target = $region62
              $region59: #{vertical_inception_forward.3} parent=54 // loop_body
                %v194 = vld [vmem:[%s192] sm:$0xff]
                %195 = vst [vmem:[%s193] sm:$0xff] %v194
                %v196 = vld [vmem:[%s192 + $0x40] sm:$0xff]
                %197 = vst [vmem:[%s193 + $0x8] sm:$0xff] %v196
                %v198 = vld [vmem:[%s192 + $0x80] sm:$0xff]
                %199 = vst [vmem:[%s193 + $0x10] sm:$0xff] %v198
                %v200 = vld [vmem:[%s192 + $0xc0] sm:$0xff]
                %201 = vst [vmem:[%s193 + $0x18] sm:$0xff] %v200
                %v202 = vld [vmem:[%s192 + $0x100] sm:$0xff]
                %203 = vst [vmem:[%s193 + $0x20] sm:$0xff] %v202
                %v204 = vld [vmem:[%s192 + $0x140] sm:$0xff]
                %205 = vst [vmem:[%s193 + $0x28] sm:$0xff] %v204
                %v206 = vld [vmem:[%s192 + $0x180] sm:$0xff]
                %207 = vst [vmem:[%s193 + $0x30] sm:$0xff] %v206
                %v208 = vld [vmem:[%s192 + $0x1c0] sm:$0xff]
                %209 = vst [vmem:[%s193 + $0x38] sm:$0xff] %v208
                %v210 = vld [vmem:[%s192 + $0x200] sm:$0xff]
                %211 = vst [vmem:[%s193 + $0x40] sm:$0xff] %v210
                %v212 = vld [vmem:[%s192 + $0x240] sm:$0xff]
                %213 = vst [vmem:[%s193 + $0x48] sm:$0xff] %v212
                %v214 = vld [vmem:[%s192 + $0x280] sm:$0xff]
                %215 = vst [vmem:[%s193 + $0x50] sm:$0xff] %v214
                %v216 = vld [vmem:[%s192 + $0x2c0] sm:$0xff]
                %217 = vst [vmem:[%s193 + $0x58] sm:$0xff] %v216
                %v218 = vld [vmem:[%s192 + $0x300] sm:$0xff]
                %219 = vst [vmem:[%s193 + $0x60] sm:$0xff] %v218
                %v220 = vld [vmem:[%s192 + $0x340] sm:$0xff]
                %221 = vst [vmem:[%s193 + $0x68] sm:$0xff] %v220
                %v222 = vld [vmem:[%s192 + $0x380] sm:$0xff]
                %223 = vst [vmem:[%s193 + $0x70] sm:$0xff] %v222
                %v224 = vld [vmem:[%s192 + $0x3c0] sm:$0xff]
                %225 = vst [vmem:[%s193 + $0x78] sm:$0xff] %v224
                %v226 = vld [vmem:[%s192 + $0x400] sm:$0xff]
                %227 = vst [vmem:[%s193 + $0x80] sm:$0xff] %v226
                %v228 = vld [vmem:[%s192 + $0x440] sm:$0xff]
                %229 = vst [vmem:[%s193 + $0x88] sm:$0xff] %v228
                %v230 = vld [vmem:[%s192 + $0x480] sm:$0xff]
                %231 = vst [vmem:[%s193 + $0x90] sm:$0xff] %v230
                %v232 = vld [vmem:[%s192 + $0x4c0] sm:$0xff]
                %233 = vst [vmem:[%s193 + $0x98] sm:$0xff] %v232
                %v234 = vld [vmem:[%s192 + $0x500] sm:$0xff]
                %235 = vst [vmem:[%s193 + $0xa0] sm:$0xff] %v234
                %v236 = vld [vmem:[%s192 + $0x540] sm:$0xff]
                %237 = vst [vmem:[%s193 + $0xa8] sm:$0xff] %v236
                %v238 = vld [vmem:[%s192 + $0x580] sm:$0xff]
                %239 = vst [vmem:[%s193 + $0xb0] sm:$0xff] %v238
                %v240 = vld [vmem:[%s192 + $0x5c0] sm:$0xff]
                %241 = vst [vmem:[%s193 + $0xb8] sm:$0xff] %v240
                %v242 = vld [vmem:[%s192 + $0x600] sm:$0xff]
                %243 = vst [vmem:[%s193 + $0xc0] sm:$0xff] %v242
                %v244 = vld [vmem:[%s192 + $0x640] sm:$0xff]
                %245 = vst [vmem:[%s193 + $0xc8] sm:$0xff] %v244
                %v246 = vld [vmem:[%s192 + $0x680] sm:$0xff]
                %247 = vst [vmem:[%s193 + $0xd0] sm:$0xff] %v246
                %v248 = vld [vmem:[%s192 + $0x6c0] sm:$0xff]
                %249 = vst [vmem:[%s193 + $0xd8] sm:$0xff] %v248
                %v250 = vld [vmem:[%s192 + $0x700] sm:$0xff]
                %251 = vst [vmem:[%s193 + $0xe0] sm:$0xff] %v250
                %v252 = vld [vmem:[%s192 + $0x740] sm:$0xff]
                %253 = vst [vmem:[%s193 + $0xe8] sm:$0xff] %v252
                %v254 = vld [vmem:[%s192 + $0x780] sm:$0xff]
                %255 = vst [vmem:[%s193 + $0xf0] sm:$0xff] %v254
                %v256 = vld [vmem:[%s192 + $0x7c0] sm:$0xff]
                %257 = vst [vmem:[%s193 + $0xf8] sm:$0xff] %v256
                %v258 = vld [vmem:[%s192 + $0x800] sm:$0xff]
                %259 = vst [vmem:[%s193 + $0x100] sm:$0xff] %v258
                %v260 = vld [vmem:[%s192 + $0x840] sm:$0xff]
                %261 = vst [vmem:[%s193 + $0x108] sm:$0xff] %v260
                %v262 = vld [vmem:[%s192 + $0x880] sm:$0xff]
                %263 = vst [vmem:[%s193 + $0x110] sm:$0xff] %v262
                %v264 = vld [vmem:[%s192 + $0x8c0] sm:$0xff]
                %265 = vst [vmem:[%s193 + $0x118] sm:$0xff] %v264
                %v266 = vld [vmem:[%s192 + $0x900] sm:$0xff]
                %267 = vst [vmem:[%s193 + $0x120] sm:$0xff] %v266
                %v268 = vld [vmem:[%s192 + $0x940] sm:$0xff]
                %269 = vst [vmem:[%s193 + $0x128] sm:$0xff] %v268
                %v270 = vld [vmem:[%s192 + $0x980] sm:$0xff]
                %271 = vst [vmem:[%s193 + $0x130] sm:$0xff] %v270
                %v272 = vld [vmem:[%s192 + $0x9c0] sm:$0xff]
                %273 = vst [vmem:[%s193 + $0x138] sm:$0xff] %v272
                %v274 = vld [vmem:[%s192 + $0xa00] sm:$0xff]
                %275 = vst [vmem:[%s193 + $0x140] sm:$0xff] %v274
                %v276 = vld [vmem:[%s192 + $0xa40] sm:$0xff]
                %277 = vst [vmem:[%s193 + $0x148] sm:$0xff] %v276
                %v278 = vld [vmem:[%s192 + $0xa80] sm:$0xff]
                %279 = vst [vmem:[%s193 + $0x150] sm:$0xff] %v278
                %v280 = vld [vmem:[%s192 + $0xac0] sm:$0xff]
                %281 = vst [vmem:[%s193 + $0x158] sm:$0xff] %v280
                %v282 = vld [vmem:[%s192 + $0xb00] sm:$0xff]
                %283 = vst [vmem:[%s193 + $0x160] sm:$0xff] %v282
                %v284 = vld [vmem:[%s192 + $0xb40] sm:$0xff]
                %285 = vst [vmem:[%s193 + $0x168] sm:$0xff] %v284
                %v286 = vld [vmem:[%s192 + $0xb80] sm:$0xff]
                %287 = vst [vmem:[%s193 + $0x170] sm:$0xff] %v286
                %v288 = vld [vmem:[%s192 + $0xbc0] sm:$0xff]
                %289 = vst [vmem:[%s193 + $0x178] sm:$0xff] %v288
                %v290 = vld [vmem:[%s192 + $0xc00] sm:$0xff]
                %291 = vst [vmem:[%s193 + $0x180] sm:$0xff] %v290
                %v292 = vld [vmem:[%s192 + $0xc40] sm:$0xff]
                %293 = vst [vmem:[%s193 + $0x188] sm:$0xff] %v292
                %v294 = vld [vmem:[%s192 + $0xc80] sm:$0xff]
                %295 = vst [vmem:[%s193 + $0x190] sm:$0xff] %v294
                %v296 = vld [vmem:[%s192 + $0xcc0] sm:$0xff]
                %297 = vst [vmem:[%s193 + $0x198] sm:$0xff] %v296
                %v298 = vld [vmem:[%s192 + $0xd00] sm:$0xff]
                %299 = vst [vmem:[%s193 + $0x1a0] sm:$0xff] %v298
                %v300 = vld [vmem:[%s192 + $0xd40] sm:$0xff]
                %301 = vst [vmem:[%s193 + $0x1a8] sm:$0xff] %v300
                %v302 = vld [vmem:[%s192 + $0xd80] sm:$0xff]
                %303 = vst [vmem:[%s193 + $0x1b0] sm:$0xff] %v302
                %v304 = vld [vmem:[%s192 + $0xdc0] sm:$0xff]
                %305 = vst [vmem:[%s193 + $0x1b8] sm:$0xff] %v304
                %v306 = vld [vmem:[%s192 + $0xe00] sm:$0xff]
                %307 = vst [vmem:[%s193 + $0x1c0] sm:$0xff] %v306
                %v308 = vld [vmem:[%s192 + $0xe40] sm:$0xff]
                %309 = vst [vmem:[%s193 + $0x1c8] sm:$0xff] %v308
                %v310 = vld [vmem:[%s192 + $0xe80] sm:$0xff]
                %311 = vst [vmem:[%s193 + $0x1d0] sm:$0xff] %v310
                %v312 = vld [vmem:[%s192 + $0xec0] sm:$0xff]
                %313 = vst [vmem:[%s193 + $0x1d8] sm:$0xff] %v312
                %v314 = vld [vmem:[%s192 + $0xf00] sm:$0xff]
                %315 = vst [vmem:[%s193 + $0x1e0] sm:$0xff] %v314
                %v316 = vld [vmem:[%s192 + $0xf40] sm:$0xff]
                %317 = vst [vmem:[%s193 + $0x1e8] sm:$0xff] %v316
                %v318 = vld [vmem:[%s192 + $0xf80] sm:$0xff]
                %319 = vst [vmem:[%s193 + $0x1f0] sm:$0xff] %v318
                %v320 = vld [vmem:[%s192 + $0xfc0] sm:$0xff]
                %321 = vst [vmem:[%s193 + $0x1f8] sm:$0xff] %v320
              $region60: #{vertical_inception_forward.3} parent=54 // loop_footer
                %s191 = sadd.s32 1, %s187
              $region61: #{vertical_inception_forward.3} parent=54 // loop_footer_branch
                %186 = sbr.rel target = $region57
              $region62: #{vertical_inception_forward.3} parent=54 // loop_exit
                _
            $region55: #{vertical_inception_forward.3} parent=46 // pred_fallthru
              _
          $region47: #{vertical_inception_forward.3} parent=42 // pred_fallthru
            _
          %462 = vnop
        $region43: #{vertical_inception_forward.3} parent=15 // pred_fallthru
          _
      $region16: #{vertical_inception_forward.3} parent=5 // pred_fallthru
        _
      %p463 = scmp.le.s32.totalorder 1, %s8
      %p464 = scmp.lt.s32.totalorder %s8, 17
      %p465 = pnand %p463, %p464
      %p466 = pneg %p465
      // Predicated region
      $region78: #{vertical_inception_forward.3} parent=5 // pred_check
        _
      $region79: #{vertical_inception_forward.3} parent=5 // pred_check_branch
        %468 = sbr.rel (%p465) target = $region81
      $region80: #{vertical_inception_forward.3} parent=5 // pred_region
        %s469 = ssub.s32 %s8, 1
        %s470 = sand.u32 %s42, 1
        %s471 = sand.u32 %s42, 1
        %s472 = smul.addr %s471, 32
        %s473 = scalar_lea.vmem [#allocation3], %s472
        // Predicated region
        $region82: #{vertical_inception_forward.3} parent=80 // pred_check
          %p474 = pneg %p55
        $region83: #{vertical_inception_forward.3} parent=80 // pred_check_branch
          %476 = sbr.rel (%p474) target = $region85
        $region84: #{vertical_inception_forward.3} parent=80 // pred_region
          _
        $region85: #{vertical_inception_forward.3} parent=80 // pred_fallthru
          _
        %s477 = sand.u32 %s70, 1
        %s478 = sand.u32 %s70, 1
        %s479 = smul.addr %s478, 512
        %s480 = scalar_lea.vmem [#allocation4], %s479
        // Predicated region
        $region86: #{vertical_inception_forward.3} parent=80 // pred_check
          %p481 = pneg %p83
        $region87: #{vertical_inception_forward.3} parent=80 // pred_check_branch
          %483 = sbr.rel (%p481) target = $region89
        $region88: #{vertical_inception_forward.3} parent=80 // pred_region
          _
        $region89: #{vertical_inception_forward.3} parent=80 // pred_fallthru
          _
        %s484 = sand.u32 %s42, 1
        %s485 = sand.u32 %s42, 1
        %s486 = smul.addr %s485, 32
        %s487 = scalar_lea.vmem [#allocation3], %s486
        %p488 = pneg %p55
        %p489 = pneg %p52
        %s490 = sand.u32 %s70, 1
        %s491 = sand.u32 %s70, 1
        %s492 = smul.addr %s491, 512
        %s493 = scalar_lea.vmem [#allocation4], %s492
        %p494 = pneg %p83
        %p495 = pneg %p80
        %p496 = pneg %p111
        %p497 = pneg %p108
        %s498 = sand.u32 %s98, 1
        %s499 = sand.u32 %s98, 1
        %s500 = smul.addr %s499, 32
        %s501 = scalar_lea.vmem [#allocation5], %s500
        %s502 = smul.u32 2, %s18
        %s503 = smul.u32 4, %s20
        %s504 = smul.u32 64, %s20
        %s505 = smul.u32 2, %s19
        %s506 = smul.u32 2, %s18
        %s507 = smul.u32 2, %s19
        %p508 = scmp.eq.s32.totalorder %s20, 0
        // Predicated region
        $region90: #{vertical_inception_forward.3} parent=80 // pred_check
          %p509 = pneg %p508
        $region91: #{vertical_inception_forward.3} parent=80 // pred_check_branch
          %511 = sbr.rel (%p509) target = $region93
        $region92: #{vertical_inception_forward.3} parent=80 // pred_region
          %512 = vst [vmem:[#allocation2] sm:$0xff] 0.0
          %513 = vst [vmem:[#allocation2 + $0x8] sm:$0xff] 0.0
          %514 = vst [vmem:[#allocation2 + $0x10] sm:$0xff] 0.0
          %515 = vst [vmem:[#allocation2 + $0x18] sm:$0xff] 0.0
        $region93: #{vertical_inception_forward.3} parent=80 // pred_fallthru
          _
        %v516 = vld [vmem:[#allocation2] sm:$0xff]
        %v517 = vld [vmem:[#allocation2 + $0x8] sm:$0xff]
        %v518 = vld [vmem:[#allocation2 + $0x10] sm:$0xff]
        %v519 = vld [vmem:[#allocation2 + $0x18] sm:$0xff]
        %v520 = vld [vmem:[%s473] sm:$0xff]
        %v521 = vld [vmem:[%s473 + $0x8] sm:$0xff]
        %v522 = vld [vmem:[%s473 + $0x10] sm:$0xff]
        %v523 = vld [vmem:[%s473 + $0x18] sm:$0xff]
        %v524 = vld [vmem:[%s480] sm:$0xff]
        %v525 = vld [vmem:[%s480 + $0x8] sm:$0xff]
        %v526 = vld [vmem:[%s480 + $0x10] sm:$0xff]
        %v527 = vld [vmem:[%s480 + $0x18] sm:$0xff]
        %v528 = vld [vmem:[%s480 + $0x20] sm:$0xff]
        %v529 = vld [vmem:[%s480 + $0x28] sm:$0xff]
        %v530 = vld [vmem:[%s480 + $0x30] sm:$0xff]
        %v531 = vld [vmem:[%s480 + $0x38] sm:$0xff]
        %v532 = vld [vmem:[%s480 + $0x40] sm:$0xff]
        %v533 = vld [vmem:[%s480 + $0x48] sm:$0xff]
        %v534 = vld [vmem:[%s480 + $0x50] sm:$0xff]
        %v535 = vld [vmem:[%s480 + $0x58] sm:$0xff]
        %v536 = vld [vmem:[%s480 + $0x60] sm:$0xff]
        %v537 = vld [vmem:[%s480 + $0x68] sm:$0xff]
        %v538 = vld [vmem:[%s480 + $0x70] sm:$0xff]
        %v539 = vld [vmem:[%s480 + $0x78] sm:$0xff]
        %v540 = vld [vmem:[%s480 + $0x80] sm:$0xff]
        %v541 = vld [vmem:[%s480 + $0x88] sm:$0xff]
        %v542 = vld [vmem:[%s480 + $0x90] sm:$0xff]
        %v543 = vld [vmem:[%s480 + $0x98] sm:$0xff]
        %v544 = vld [vmem:[%s480 + $0xa0] sm:$0xff]
        %v545 = vld [vmem:[%s480 + $0xa8] sm:$0xff]
        %v546 = vld [vmem:[%s480 + $0xb0] sm:$0xff]
        %v547 = vld [vmem:[%s480 + $0xb8] sm:$0xff]
        %v548 = vld [vmem:[%s480 + $0xc0] sm:$0xff]
        %v549 = vld [vmem:[%s480 + $0xc8] sm:$0xff]
        %v550 = vld [vmem:[%s480 + $0xd0] sm:$0xff]
        %v551 = vld [vmem:[%s480 + $0xd8] sm:$0xff]
        %v552 = vld [vmem:[%s480 + $0xe0] sm:$0xff]
        %v553 = vld [vmem:[%s480 + $0xe8] sm:$0xff]
        %v554 = vld [vmem:[%s480 + $0xf0] sm:$0xff]
        %v555 = vld [vmem:[%s480 + $0xf8] sm:$0xff]
        %v556 = vld [vmem:[%s480 + $0x100] sm:$0xff]
        %v557 = vld [vmem:[%s480 + $0x108] sm:$0xff]
        %v558 = vld [vmem:[%s480 + $0x110] sm:$0xff]
        %v559 = vld [vmem:[%s480 + $0x118] sm:$0xff]
        %v560 = vld [vmem:[%s480 + $0x120] sm:$0xff]
        %v561 = vld [vmem:[%s480 + $0x128] sm:$0xff]
        %v562 = vld [vmem:[%s480 + $0x130] sm:$0xff]
        %v563 = vld [vmem:[%s480 + $0x138] sm:$0xff]
        %v564 = vld [vmem:[%s480 + $0x140] sm:$0xff]
        %v565 = vld [vmem:[%s480 + $0x148] sm:$0xff]
        %v566 = vld [vmem:[%s480 + $0x150] sm:$0xff]
        %v567 = vld [vmem:[%s480 + $0x158] sm:$0xff]
        %v568 = vld [vmem:[%s480 + $0x160] sm:$0xff]
        %v569 = vld [vmem:[%s480 + $0x168] sm:$0xff]
        %v570 = vld [vmem:[%s480 + $0x170] sm:$0xff]
        %v571 = vld [vmem:[%s480 + $0x178] sm:$0xff]
        %v572 = vld [vmem:[%s480 + $0x180] sm:$0xff]
        %v573 = vld [vmem:[%s480 + $0x188] sm:$0xff]
        %v574 = vld [vmem:[%s480 + $0x190] sm:$0xff]
        %v575 = vld [vmem:[%s480 + $0x198] sm:$0xff]
        %v576 = vld [vmem:[%s480 + $0x1a0] sm:$0xff]
        %v577 = vld [vmem:[%s480 + $0x1a8] sm:$0xff]
        %v578 = vld [vmem:[%s480 + $0x1b0] sm:$0xff]
        %v579 = vld [vmem:[%s480 + $0x1b8] sm:$0xff]
        %v580 = vld [vmem:[%s480 + $0x1c0] sm:$0xff]
        %v581 = vld [vmem:[%s480 + $0x1c8] sm:$0xff]
        %v582 = vld [vmem:[%s480 + $0x1d0] sm:$0xff]
        %v583 = vld [vmem:[%s480 + $0x1d8] sm:$0xff]
        %v584 = vld [vmem:[%s480 + $0x1e0] sm:$0xff]
        %v585 = vld [vmem:[%s480 + $0x1e8] sm:$0xff]
        %v586 = vld [vmem:[%s480 + $0x1f0] sm:$0xff]
        %v587 = vld [vmem:[%s480 + $0x1f8] sm:$0xff]
        %v592 = vunpack.c.l.b16 %v520
        %v593 = vunpack.c.h.b16 %v520
        %v594 = vunpack.c.l.b16 %v521
        %v595 = vunpack.c.h.b16 %v521
        %v596 = vunpack.c.l.b16 %v522
        %v597 = vunpack.c.h.b16 %v522
        %v598 = vunpack.c.l.b16 %v523
        %v599 = vunpack.c.h.b16 %v523
        %v600 = vpack.c.b16 %v596, %v592
        %v601 = vpack.c.b16 %v597, %v593
        %v602 = vpack.c.b16 %v598, %v594
        %v603 = vpack.c.b16 %v599, %v595
        %v672 = vunpack.c.l.b16 %v524
        %v673 = vunpack.c.h.b16 %v524
        %v674 = vunpack.c.l.b16 %v525
        %v675 = vunpack.c.h.b16 %v525
        %v676 = vunpack.c.l.b16 %v526
        %v677 = vunpack.c.h.b16 %v526
        %v678 = vunpack.c.l.b16 %v527
        %v679 = vunpack.c.h.b16 %v527
        %v680 = vunpack.c.l.b16 %v528
        %v681 = vunpack.c.h.b16 %v528
        %v682 = vunpack.c.l.b16 %v529
        %v683 = vunpack.c.h.b16 %v529
        %v684 = vunpack.c.l.b16 %v530
        %v685 = vunpack.c.h.b16 %v530
        %v686 = vunpack.c.l.b16 %v531
        %v687 = vunpack.c.h.b16 %v531
        %v688 = vunpack.c.l.b16 %v532
        %v689 = vunpack.c.h.b16 %v532
        %v690 = vunpack.c.l.b16 %v533
        %v691 = vunpack.c.h.b16 %v533
        %v692 = vunpack.c.l.b16 %v534
        %v693 = vunpack.c.h.b16 %v534
        %v694 = vunpack.c.l.b16 %v535
        %v695 = vunpack.c.h.b16 %v535
        %v696 = vunpack.c.l.b16 %v536
        %v697 = vunpack.c.h.b16 %v536
        %v698 = vunpack.c.l.b16 %v537
        %v699 = vunpack.c.h.b16 %v537
        %v700 = vunpack.c.l.b16 %v538
        %v701 = vunpack.c.h.b16 %v538
        %v702 = vunpack.c.l.b16 %v539
        %v703 = vunpack.c.h.b16 %v539
        %v704 = vunpack.c.l.b16 %v540
        %v705 = vunpack.c.h.b16 %v540
        %v706 = vunpack.c.l.b16 %v541
        %v707 = vunpack.c.h.b16 %v541
        %v708 = vunpack.c.l.b16 %v542
        %v709 = vunpack.c.h.b16 %v542
        %v710 = vunpack.c.l.b16 %v543
        %v711 = vunpack.c.h.b16 %v543
        %v712 = vunpack.c.l.b16 %v544
        %v713 = vunpack.c.h.b16 %v544
        %v714 = vunpack.c.l.b16 %v545
        %v715 = vunpack.c.h.b16 %v545
        %v716 = vunpack.c.l.b16 %v546
        %v717 = vunpack.c.h.b16 %v546
        %v718 = vunpack.c.l.b16 %v547
        %v719 = vunpack.c.h.b16 %v547
        %v720 = vunpack.c.l.b16 %v548
        %v721 = vunpack.c.h.b16 %v548
        %v722 = vunpack.c.l.b16 %v549
        %v723 = vunpack.c.h.b16 %v549
        %v724 = vunpack.c.l.b16 %v550
        %v725 = vunpack.c.h.b16 %v550
        %v726 = vunpack.c.l.b16 %v551
        %v727 = vunpack.c.h.b16 %v551
        %v728 = vunpack.c.l.b16 %v552
        %v729 = vunpack.c.h.b16 %v552
        %v730 = vunpack.c.l.b16 %v553
        %v731 = vunpack.c.h.b16 %v553
        %v732 = vunpack.c.l.b16 %v554
        %v733 = vunpack.c.h.b16 %v554
        %v734 = vunpack.c.l.b16 %v555
        %v735 = vunpack.c.h.b16 %v555
        %v736 = vunpack.c.l.b16 %v556
        %v737 = vunpack.c.h.b16 %v556
        %v738 = vunpack.c.l.b16 %v557
        %v739 = vunpack.c.h.b16 %v557
        %v740 = vunpack.c.l.b16 %v558
        %v741 = vunpack.c.h.b16 %v558
        %v742 = vunpack.c.l.b16 %v559
        %v743 = vunpack.c.h.b16 %v559
        %v744 = vunpack.c.l.b16 %v560
        %v745 = vunpack.c.h.b16 %v560
        %v746 = vunpack.c.l.b16 %v561
        %v747 = vunpack.c.h.b16 %v561
        %v748 = vunpack.c.l.b16 %v562
        %v749 = vunpack.c.h.b16 %v562
        %v750 = vunpack.c.l.b16 %v563
        %v751 = vunpack.c.h.b16 %v563
        %v752 = vunpack.c.l.b16 %v564
        %v753 = vunpack.c.h.b16 %v564
        %v754 = vunpack.c.l.b16 %v565
        %v755 = vunpack.c.h.b16 %v565
        %v756 = vunpack.c.l.b16 %v566
        %v757 = vunpack.c.h.b16 %v566
        %v758 = vunpack.c.l.b16 %v567
        %v759 = vunpack.c.h.b16 %v567
        %v760 = vunpack.c.l.b16 %v568
        %v761 = vunpack.c.h.b16 %v568
        %v762 = vunpack.c.l.b16 %v569
        %v763 = vunpack.c.h.b16 %v569
        %v764 = vunpack.c.l.b16 %v570
        %v765 = vunpack.c.h.b16 %v570
        %v766 = vunpack.c.l.b16 %v571
        %v767 = vunpack.c.h.b16 %v571
        %v768 = vunpack.c.l.b16 %v572
        %v769 = vunpack.c.h.b16 %v572
        %v770 = vunpack.c.l.b16 %v573
        %v771 = vunpack.c.h.b16 %v573
        %v772 = vunpack.c.l.b16 %v574
        %v773 = vunpack.c.h.b16 %v574
        %v774 = vunpack.c.l.b16 %v575
        %v775 = vunpack.c.h.b16 %v575
        %v776 = vunpack.c.l.b16 %v576
        %v777 = vunpack.c.h.b16 %v576
        %v778 = vunpack.c.l.b16 %v577
        %v779 = vunpack.c.h.b16 %v577
        %v780 = vunpack.c.l.b16 %v578
        %v781 = vunpack.c.h.b16 %v578
        %v782 = vunpack.c.l.b16 %v579
        %v783 = vunpack.c.h.b16 %v579
        %v784 = vunpack.c.l.b16 %v580
        %v785 = vunpack.c.h.b16 %v580
        %v786 = vunpack.c.l.b16 %v581
        %v787 = vunpack.c.h.b16 %v581
        %v788 = vunpack.c.l.b16 %v582
        %v789 = vunpack.c.h.b16 %v582
        %v790 = vunpack.c.l.b16 %v583
        %v791 = vunpack.c.h.b16 %v583
        %v792 = vunpack.c.l.b16 %v584
        %v793 = vunpack.c.h.b16 %v584
        %v794 = vunpack.c.l.b16 %v585
        %v795 = vunpack.c.h.b16 %v585
        %v796 = vunpack.c.l.b16 %v586
        %v797 = vunpack.c.h.b16 %v586
        %v798 = vunpack.c.l.b16 %v587
        %v799 = vunpack.c.h.b16 %v587
        %v800 = vpack.c.b16 %v674, %v672
        %v801 = vpack.c.b16 %v675, %v673
        %v802 = vpack.c.b16 %v678, %v676
        %v803 = vpack.c.b16 %v679, %v677
        %v804 = vpack.c.b16 %v682, %v680
        %v805 = vpack.c.b16 %v683, %v681
        %v806 = vpack.c.b16 %v686, %v684
        %v807 = vpack.c.b16 %v687, %v685
        %v808 = vpack.c.b16 %v690, %v688
        %v809 = vpack.c.b16 %v691, %v689
        %v810 = vpack.c.b16 %v694, %v692
        %v811 = vpack.c.b16 %v695, %v693
        %v812 = vpack.c.b16 %v698, %v696
        %v813 = vpack.c.b16 %v699, %v697
        %v814 = vpack.c.b16 %v702, %v700
        %v815 = vpack.c.b16 %v703, %v701
        %v816 = vpack.c.b16 %v706, %v704
        %v817 = vpack.c.b16 %v707, %v705
        %v818 = vpack.c.b16 %v710, %v708
        %v819 = vpack.c.b16 %v711, %v709
        %v820 = vpack.c.b16 %v714, %v712
        %v821 = vpack.c.b16 %v715, %v713
        %v822 = vpack.c.b16 %v718, %v716
        %v823 = vpack.c.b16 %v719, %v717
        %v824 = vpack.c.b16 %v722, %v720
        %v825 = vpack.c.b16 %v723, %v721
        %v826 = vpack.c.b16 %v726, %v724
        %v827 = vpack.c.b16 %v727, %v725
        %v828 = vpack.c.b16 %v730, %v728
        %v829 = vpack.c.b16 %v731, %v729
        %v830 = vpack.c.b16 %v734, %v732
        %v831 = vpack.c.b16 %v735, %v733
        %v832 = vpack.c.b16 %v738, %v736
        %v833 = vpack.c.b16 %v739, %v737
        %v834 = vpack.c.b16 %v742, %v740
        %v835 = vpack.c.b16 %v743, %v741
        %v836 = vpack.c.b16 %v746, %v744
        %v837 = vpack.c.b16 %v747, %v745
        %v838 = vpack.c.b16 %v750, %v748
        %v839 = vpack.c.b16 %v751, %v749
        %v840 = vpack.c.b16 %v754, %v752
        %v841 = vpack.c.b16 %v755, %v753
        %v842 = vpack.c.b16 %v758, %v756
        %v843 = vpack.c.b16 %v759, %v757
        %v844 = vpack.c.b16 %v762, %v760
        %v845 = vpack.c.b16 %v763, %v761
        %v846 = vpack.c.b16 %v766, %v764
        %v847 = vpack.c.b16 %v767, %v765
        %v848 = vpack.c.b16 %v770, %v768
        %v849 = vpack.c.b16 %v771, %v769
        %v850 = vpack.c.b16 %v774, %v772
        %v851 = vpack.c.b16 %v775, %v773
        %v852 = vpack.c.b16 %v778, %v776
        %v853 = vpack.c.b16 %v779, %v777
        %v854 = vpack.c.b16 %v782, %v780
        %v855 = vpack.c.b16 %v783, %v781
        %v856 = vpack.c.b16 %v786, %v784
        %v857 = vpack.c.b16 %v787, %v785
        %v858 = vpack.c.b16 %v790, %v788
        %v859 = vpack.c.b16 %v791, %v789
        %v860 = vpack.c.b16 %v794, %v792
        %v861 = vpack.c.b16 %v795, %v793
        %v862 = vpack.c.b16 %v798, %v796
        %v863 = vpack.c.b16 %v799, %v797
        %928 = vmatprep.subr.bf16.mxu0 %v801
        %929 = vmatpush1.bf16.msra.mxu0 %v800
        %930 = vmatprep.subr.bf16.mxu0 %v803
        %931 = vmatpush1.bf16.msra.mxu0 %v802
        %932 = vmatprep.subr.bf16.mxu0 %v805
        %933 = vmatpush1.bf16.msra.mxu0 %v804
        %934 = vmatprep.subr.bf16.mxu0 %v807
        %935 = vmatpush1.bf16.msra.mxu0 %v806
        %936 = vmatprep.subr.bf16.mxu0 %v809
        %937 = vmatpush1.bf16.msra.mxu0 %v808
        %938 = vmatprep.subr.bf16.mxu0 %v811
        %939 = vmatpush1.bf16.msra.mxu0 %v810
        %940 = vmatprep.subr.bf16.mxu0 %v813
        %941 = vmatpush1.bf16.msra.mxu0 %v812
        %942 = vmatprep.subr.bf16.mxu0 %v815
        %943 = vmatpush1.bf16.msra.mxu0 %v814
        %944 = vmatprep.subr.bf16.mxu0 %v817
        %945 = vmatpush1.bf16.msra.mxu0 %v816
        %946 = vmatprep.subr.bf16.mxu0 %v819
        %947 = vmatpush1.bf16.msra.mxu0 %v818
        %948 = vmatprep.subr.bf16.mxu0 %v821
        %949 = vmatpush1.bf16.msra.mxu0 %v820
        %950 = vmatprep.subr.bf16.mxu0 %v823
        %951 = vmatpush1.bf16.msra.mxu0 %v822
        %952 = vmatprep.subr.bf16.mxu0 %v825
        %953 = vmatpush1.bf16.msra.mxu0 %v824
        %954 = vmatprep.subr.bf16.mxu0 %v827
        %955 = vmatpush1.bf16.msra.mxu0 %v826
        %956 = vmatprep.subr.bf16.mxu0 %v829
        %957 = vmatpush1.bf16.msra.mxu0 %v828
        %958 = vmatprep.subr.bf16.mxu0 %v831
        %959 = vmatpush1.bf16.msra.mxu0 %v830
        %960 = vmatprep.mubr.bf16.mxu0 %v601
        %961 = vmatmul.mubr.bf16.gmra.mrb[0].mxu0 %v600
        %v962 = vpop.f32.mrb[0].mxu0
        %v963 = vadd.f32 0.0, %v962
        %v964 = vpop.f32.mrb[0].mxu0
        %v965 = vadd.f32 0.0, %v964
        %v966 = vpop.f32.mrb[0].mxu0
        %v967 = vadd.f32 0.0, %v966
        %v968 = vpop.f32.mrb[0].mxu0
        %v969 = vadd.f32 0.0, %v968
        %970 = vdwg.mxu0
        %971 = vmatprep.subr.bf16.mxu0 %v833
        %972 = vmatpush1.bf16.msra.mxu0 %v832
        %973 = vmatprep.subr.bf16.mxu0 %v835
        %974 = vmatpush1.bf16.msra.mxu0 %v834
        %975 = vmatprep.subr.bf16.mxu0 %v837
        %976 = vmatpush1.bf16.msra.mxu0 %v836
        %977 = vmatprep.subr.bf16.mxu0 %v839
        %978 = vmatpush1.bf16.msra.mxu0 %v838
        %979 = vmatprep.subr.bf16.mxu0 %v841
        %980 = vmatpush1.bf16.msra.mxu0 %v840
        %981 = vmatprep.subr.bf16.mxu0 %v843
        %982 = vmatpush1.bf16.msra.mxu0 %v842
        %983 = vmatprep.subr.bf16.mxu0 %v845
        %984 = vmatpush1.bf16.msra.mxu0 %v844
        %985 = vmatprep.subr.bf16.mxu0 %v847
        %986 = vmatpush1.bf16.msra.mxu0 %v846
        %987 = vmatprep.subr.bf16.mxu0 %v849
        %988 = vmatpush1.bf16.msra.mxu0 %v848
        %989 = vmatprep.subr.bf16.mxu0 %v851
        %990 = vmatpush1.bf16.msra.mxu0 %v850
        %991 = vmatprep.subr.bf16.mxu0 %v853
        %992 = vmatpush1.bf16.msra.mxu0 %v852
        %993 = vmatprep.subr.bf16.mxu0 %v855
        %994 = vmatpush1.bf16.msra.mxu0 %v854
        %995 = vmatprep.subr.bf16.mxu0 %v857
        %996 = vmatpush1.bf16.msra.mxu0 %v856
        %997 = vmatprep.subr.bf16.mxu0 %v859
        %998 = vmatpush1.bf16.msra.mxu0 %v858
        %999 = vmatprep.subr.bf16.mxu0 %v861
        %1000 = vmatpush1.bf16.msra.mxu0 %v860
        %1001 = vmatprep.subr.bf16.mxu0 %v863
        %1002 = vmatpush1.bf16.msra.mxu0 %v862
        %1003 = vmatprep.mubr.bf16.mxu0 %v603
        %1004 = vmatmul.mubr.bf16.gmra.mrb[0].mxu0 %v602
        %v1005 = vpop.f32.mrb[0].mxu0
        %v1006 = vadd.f32 %v963, %v1005
        %v1007 = vpop.f32.mrb[0].mxu0
        %v1008 = vadd.f32 %v965, %v1007
        %v1009 = vpop.f32.mrb[0].mxu0
        %v1010 = vadd.f32 %v967, %v1009
        %v1011 = vpop.f32.mrb[0].mxu0
        %v1012 = vadd.f32 %v969, %v1011
        %1013 = vdwg.mxu0
        %v1014 = vadd.f32 %v516, %v1006
        %v1015 = vadd.f32 %v517, %v1008
        %v1016 = vadd.f32 %v518, %v1010
        %v1017 = vadd.f32 %v519, %v1012
        %1018 = vst [vmem:[#allocation2] sm:$0xff] %v1014
        %1019 = vst [vmem:[#allocation2 + $0x8] sm:$0xff] %v1015
        %1020 = vst [vmem:[#allocation2 + $0x10] sm:$0xff] %v1016
        %1021 = vst [vmem:[#allocation2 + $0x18] sm:$0xff] %v1017
        %p1022 = scmp.eq.s32.totalorder %s20, 1
        // Predicated region
        $region94: #{vertical_inception_forward.3} parent=80 // pred_check
          %p1023 = pneg %p1022
        $region95: #{vertical_inception_forward.3} parent=80 // pred_check_branch
          %1025 = sbr.rel (%p1023) target = $region97
        $region96: #{vertical_inception_forward.3} parent=80 // pred_region
          %v1026 = vld [vmem:[#allocation2] sm:$0xff]
          %v1027 = vld [vmem:[#allocation2 + $0x8] sm:$0xff]
          %v1028 = vld [vmem:[#allocation2 + $0x10] sm:$0xff]
          %v1029 = vld [vmem:[#allocation2 + $0x18] sm:$0xff]
          %1030 = vst [vmem:[%s501] sm:$0xff] %v1026
          %1031 = vst [vmem:[%s501 + $0x8] sm:$0xff] %v1027
          %1032 = vst [vmem:[%s501 + $0x10] sm:$0xff] %v1028
          %1033 = vst [vmem:[%s501 + $0x18] sm:$0xff] %v1029
        $region97: #{vertical_inception_forward.3} parent=80 // pred_fallthru
          _
        %s1034 = sand.u32 %s98, 1
        %s1035 = sand.u32 %s98, 1
        %s1036 = smul.addr %s1035, 32
        %s1037 = scalar_lea.vmem [#allocation5], %s1036
        // Predicated region
        $region98: #{vertical_inception_forward.3} parent=80 // pred_check
          %p1038 = pneg %p108
        $region99: #{vertical_inception_forward.3} parent=80 // pred_check_branch
          %1040 = sbr.rel (%p1038) target = $region101
        $region100: #{vertical_inception_forward.3} parent=80 // pred_region
          %s1041 = smul.u32 2, %s18
          %s1042 = smul.u32 2, %s19
          %s1043 = smul.addr %s1041, 16
          %s1044 = sadd.s32 %s1042, %s1043
          %s1045 = smul.addr %s1044, 8
          %s1046 = scalar_lea.vmem %s2, %s1045
          // Predicated region
          $region102: #{vertical_inception_forward.3} parent=100 // pred_check
            _
          $region103: #{vertical_inception_forward.3} parent=100 // pred_check_branch
            %1048 = sbr.rel (0) target = $region105
          $region104: #{vertical_inception_forward.3} parent=100 // pred_region
            // Predicated region
            $region106: #{vertical_inception_forward.3} parent=104 // pred_check
              _
            $region107: #{vertical_inception_forward.3} parent=104 // pred_check_branch
              %1050 = sbr.rel (0) target = $region109
            $region108: #{vertical_inception_forward.3} parent=104 // pred_region
              loop: start=0, step=1, limit=1
              $region110: #{vertical_inception_forward.3} parent=108 // loop_pre_header
                _
              $region111: #{vertical_inception_forward.3} parent=108 // loop_header
                %s1052 = sphi 0, %s1056
                %p1053 = scmp.ge.s32.totalorder %s1052, 1
                %s1057 = sphi %s1037, %s1037
                %s1058 = sphi %s1046, %s1046
              $region112: #{vertical_inception_forward.3} parent=108 // loop_header_branch
                %1055 = sbr.rel (%p1053) target = $region116
              $region113: #{vertical_inception_forward.3} parent=108 // loop_body
                %v1059 = vld [vmem:[%s1057] sm:$0xff]
                %1060 = vst [vmem:[%s1058] sm:$0xff] %v1059
                %v1061 = vld [vmem:[%s1057 + $0x8] sm:$0xff]
                %1062 = vst [vmem:[%s1058 + $0x8] sm:$0xff] %v1061
                %v1063 = vld [vmem:[%s1057 + $0x10] sm:$0xff]
                %1064 = vst [vmem:[%s1058 + $0x80] sm:$0xff] %v1063
                %v1065 = vld [vmem:[%s1057 + $0x18] sm:$0xff]
                %1066 = vst [vmem:[%s1058 + $0x88] sm:$0xff] %v1065
              $region114: #{vertical_inception_forward.3} parent=108 // loop_footer
                %s1056 = sadd.s32 1, %s1052
              $region115: #{vertical_inception_forward.3} parent=108 // loop_footer_branch
                %1051 = sbr.rel target = $region111
              $region116: #{vertical_inception_forward.3} parent=108 // loop_exit
                _
            $region109: #{vertical_inception_forward.3} parent=104 // pred_fallthru
              _
            // Predicated region
            $region117: #{vertical_inception_forward.3} parent=104 // pred_check
              _
            $region118: #{vertical_inception_forward.3} parent=104 // pred_check_branch
              %1068 = sbr.rel target = $region120
            $region119: #{vertical_inception_forward.3} parent=104 // pred_region
              _
            $region120: #{vertical_inception_forward.3} parent=104 // pred_fallthru
              _
          $region105: #{vertical_inception_forward.3} parent=100 // pred_fallthru
            _
          %1069 = vnop
        $region101: #{vertical_inception_forward.3} parent=80 // pred_fallthru
          _
      $region81: #{vertical_inception_forward.3} parent=5 // pred_fallthru
        _
      %p1070 = scmp.le.s32.totalorder 2, %s8
      // Predicated region
      $region121: #{vertical_inception_forward.3} parent=5 // pred_check
        %p1071 = pneg %p1070
      $region122: #{vertical_inception_forward.3} parent=5 // pred_check_branch
        %1073 = sbr.rel (%p1071) target = $region124
      $region123: #{vertical_inception_forward.3} parent=5 // pred_region
        %s1074 = ssub.s32 %s8, 2
        // Predicated region
        $region125: #{vertical_inception_forward.3} parent=123 // pred_check
          %p1075 = pneg %p114
        $region126: #{vertical_inception_forward.3} parent=123 // pred_check_branch
          %1077 = sbr.rel (%p1075) target = $region128
        $region127: #{vertical_inception_forward.3} parent=123 // pred_region
          %s1078 = sand.u32 %s99, 1
          %s1079 = sand.u32 %s99, 1
          %s1080 = smul.addr %s1079, 32
          %s1081 = scalar_lea.vmem [#allocation5], %s1080
        $region128: #{vertical_inception_forward.3} parent=123 // pred_fallthru
          _
      $region124: #{vertical_inception_forward.3} parent=5 // pred_fallthru
        _
    $region6: #{vertical_inception_forward.3} parent=1 // loop_footer
      %s12 = sadd.s32 1, %s8
    $region7: #{vertical_inception_forward.3} parent=1 // loop_footer_branch
      %7 = sbr.rel target = $region3
    $region8: #{vertical_inception_forward.3} parent=1 // loop_exit
      _

// kernel: vertical_inception_forward.4
$region0: #{vertical_inception_forward.4}
  #allocation0 [shape = 'u32[]', space=smem, size = 0x4, offset = 0x4, fixed_abs, tag = 'smem constant byte address 0x4 - core index']
  #allocation1 [shape = 'u32[144,128]{1,0:T(1,128)}', space=vmem, size = 0x12000, scoped, tag = 'internal scratch']
  %s0 = inlined_call_operand.vmem [shape: f32[16,2048], index: 0, kind: input, shape index: {}]
  %s1 = inlined_call_operand.vmem [shape: f32[1,512], index: 1, kind: output, shape index: {0}]
  %s2 = inlined_call_operand.vmem [shape: f32[1,512], index: 2, kind: output, shape index: {1}]
  %3 = xla_tuple %s1, %s2
  %s4 = sld [smem:[#allocation0]]
  $region26: #{vertical_inception_forward.4} parent=0
    _
  %s6 = ssub.s32 1, %s4
  %s7 = scalar_select 0, %s6, %s4
  // Predicated region
  $region2: #{vertical_inception_forward.4} parent=0 // pred_check
    _
  $region3: #{vertical_inception_forward.4} parent=0 // pred_check_branch
    %9 = sbr.rel (0) target = $region5
  $region4: #{vertical_inception_forward.4} parent=0 // pred_region
    _
  $region5: #{vertical_inception_forward.4} parent=0 // pred_fallthru
    _
  %p10 = scmp.eq.s32.totalorder 0, 0
  // Predicated region
  $region6: #{vertical_inception_forward.4} parent=0 // pred_check
    %p11 = pneg %p10
  $region7: #{vertical_inception_forward.4} parent=0 // pred_check_branch
    %13 = sbr.rel (%p11) target = $region9
  $region8: #{vertical_inception_forward.4} parent=0 // pred_region
    %v14 = vlaneseq
    %vm15 = vcmp.ge.s32.totalorder %v14, 0
    %vm16 = vcmp.lt.s32.totalorder %v14, 512
    %vm17 = vmand %vm15, %vm16
    %18 = vst.msk [vmem:[%s1] sm:$0xf] %vm17, 0.0
    %19 = vst.msk [vmem:[%s2] sm:$0xf] %vm17, 0.0
  $region9: #{vertical_inception_forward.4} parent=0 // pred_fallthru
    _
  %v20 = vld [vmem:[%s0] sm:$0xff]
  %v21 = vld [vmem:[%s0 + $0x8] sm:$0xff]
  %v22 = vld [vmem:[%s0 + $0x10] sm:$0xff]
  %v23 = vld [vmem:[%s0 + $0x18] sm:$0xff]
  %v24 = vld [vmem:[%s0 + $0x20] sm:$0xff]
  %v25 = vld [vmem:[%s0 + $0x28] sm:$0xff]
  %v26 = vld [vmem:[%s0 + $0x30] sm:$0xff]
  %v27 = vld [vmem:[%s0 + $0x38] sm:$0xff]
  %v28 = vld [vmem:[%s0 + $0x40] sm:$0xff]
  %v29 = vld [vmem:[%s0 + $0x48] sm:$0xff]
  %v30 = vld [vmem:[%s0 + $0x50] sm:$0xff]
  %v31 = vld [vmem:[%s0 + $0x58] sm:$0xff]
  %v32 = vld [vmem:[%s0 + $0x80] sm:$0xff]
  %v33 = vld [vmem:[%s0 + $0x88] sm:$0xff]
  %v34 = vld [vmem:[%s0 + $0x90] sm:$0xff]
  %v35 = vld [vmem:[%s0 + $0x98] sm:$0xff]
  %v36 = vld [vmem:[%s0 + $0xa0] sm:$0xff]
  %v37 = vld [vmem:[%s0 + $0xa8] sm:$0xff]
  %v38 = vld [vmem:[%s0 + $0xb0] sm:$0xff]
  %v39 = vld [vmem:[%s0 + $0xb8] sm:$0xff]
  %v40 = vld [vmem:[%s0 + $0xc0] sm:$0xff]
  %v41 = vld [vmem:[%s0 + $0xc8] sm:$0xff]
  %v42 = vld [vmem:[%s0 + $0xd0] sm:$0xff]
  %v43 = vld [vmem:[%s0 + $0xd8] sm:$0xff]
  %v44 = vmax.f32 %v20, 0.0
  %v45 = vmax.f32 %v21, 0.0
  %v46 = vmax.f32 %v22, 0.0
  %v47 = vmax.f32 %v23, 0.0
  %v48 = vmax.f32 %v32, 0.0
  %v49 = vmax.f32 %v33, 0.0
  %v50 = vmax.f32 %v34, 0.0
  %v51 = vmax.f32 %v35, 0.0
  %v52 = vmax.f32 %v24, 0.0
  %v53 = vmax.f32 %v25, 0.0
  %v54 = vmax.f32 %v26, 0.0
  %v55 = vmax.f32 %v27, 0.0
  %v56 = vmax.f32 %v36, 0.0
  %v57 = vmax.f32 %v37, 0.0
  %v58 = vmax.f32 %v38, 0.0
  %v59 = vmax.f32 %v39, 0.0
  %v60 = vadd.f32 %v44, %v52
  %v61 = vadd.f32 %v45, %v53
  %v62 = vadd.f32 %v46, %v54
  %v63 = vadd.f32 %v47, %v55
  %v64 = vadd.f32 %v48, %v56
  %v65 = vadd.f32 %v49, %v57
  %v66 = vadd.f32 %v50, %v58
  %v67 = vadd.f32 %v51, %v59
  %v68 = vmax.f32 %v28, 0.0
  %v69 = vmax.f32 %v29, 0.0
  %v70 = vmax.f32 %v30, 0.0
  %v71 = vmax.f32 %v31, 0.0
  %v72 = vmax.f32 %v40, 0.0
  %v73 = vmax.f32 %v41, 0.0
  %v74 = vmax.f32 %v42, 0.0
  %v75 = vmax.f32 %v43, 0.0
  %v76 = vadd.f32 %v60, %v68
  %v77 = vadd.f32 %v61, %v69
  %v78 = vadd.f32 %v62, %v70
  %v79 = vadd.f32 %v63, %v71
  %v80 = vadd.f32 %v64, %v72
  %v81 = vadd.f32 %v65, %v73
  %v82 = vadd.f32 %v66, %v74
  %v83 = vadd.f32 %v67, %v75
  %v84 = vld [vmem:[%s1] sm:$0xf]
  %v85 = vadd.f32 %v76, %v80
  %v86 = vrot.slane %v85, 4
  %v87 = vadd.f32 %v85, %v86
  %v88 = vrot.slane %v87, 2
  %v89 = vadd.f32 %v87, %v88
  %v90 = vrot.slane %v89, 1
  %v91 = vadd.f32 %v89, %v90
  %v92 = vadd.f32 %v77, %v81
  %v93 = vrot.slane %v92, 4
  %v94 = vadd.f32 %v92, %v93
  %v95 = vrot.slane %v94, 2
  %v96 = vadd.f32 %v94, %v95
  %v97 = vrot.slane %v96, 1
  %v98 = vadd.f32 %v96, %v97
  %v99 = vadd.f32 %v78, %v82
  %v100 = vrot.slane %v99, 4
  %v101 = vadd.f32 %v99, %v100
  %v102 = vrot.slane %v101, 2
  %v103 = vadd.f32 %v101, %v102
  %v104 = vrot.slane %v103, 1
  %v105 = vadd.f32 %v103, %v104
  %v106 = vadd.f32 %v79, %v83
  %v107 = vrot.slane %v106, 4
  %v108 = vadd.f32 %v106, %v107
  %v109 = vrot.slane %v108, 2
  %v110 = vadd.f32 %v108, %v109
  %v111 = vrot.slane %v110, 1
  %v112 = vadd.f32 %v110, %v111
  %v117 = vcombine.low %v91, %v98
  %v118 = vcombine.low %v105, %v112
  %v120 = vunpack.c.l.s4 1966171168
  %v121 = vunpack.c.0.s8 %v120
  %v122 = vlaneseq
  %v123 = vshrl.u32 %v122, 7
  %v124 = vsub.s32 %v121, %v123
  %v125 = vrot.slane %v117, %v124
  %v127 = vunpack.c.l.s4 1966171168
  %v128 = vunpack.c.0.s8 %v127
  %v129 = vlaneseq
  %v130 = vshrl.u32 %v129, 7
  %v131 = vsub.s32 %v128, %v130
  %v132 = vrot.slane %v118, %v131
  %v133 = vcombine.low %v125, %v132
  %v135 = vunpack.c.l.s4 1966171168
  %v136 = vunpack.c.0.s8 %v135
  %v137 = vlaneseq
  %v138 = vshrl.u32 %v137, 7
  %v139 = vsub.s32 %v136, %v138
  %v140 = vrot.slane %v133, %v139
  %v142 = vadd.f32 %v84, %v140
  %v143 = vlaneseq
  %vm144 = vcmp.ge.s32.totalorder %v143, 0
  %vm145 = vcmp.lt.s32.totalorder %v143, 512
  %vm146 = vmand %vm144, %vm145
  %147 = vst.msk [vmem:[%s1] sm:$0xf] %vm146, %v142
  %v148 = vld [vmem:[%s2] sm:$0xf]
  %v149 = vmul.f32 %v76, %v76
  %v150 = vmul.f32 %v77, %v77
  %v151 = vmul.f32 %v78, %v78
  %v152 = vmul.f32 %v79, %v79
  %v153 = vmul.f32 %v80, %v80
  %v154 = vmul.f32 %v81, %v81
  %v155 = vmul.f32 %v82, %v82
  %v156 = vmul.f32 %v83, %v83
  %v157 = vadd.f32 %v149, %v153
  %v158 = vrot.slane %v157, 4
  %v159 = vadd.f32 %v157, %v158
  %v160 = vrot.slane %v159, 2
  %v161 = vadd.f32 %v159, %v160
  %v162 = vrot.slane %v161, 1
  %v163 = vadd.f32 %v161, %v162
  %v164 = vadd.f32 %v150, %v154
  %v165 = vrot.slane %v164, 4
  %v166 = vadd.f32 %v164, %v165
  %v167 = vrot.slane %v166, 2
  %v168 = vadd.f32 %v166, %v167
  %v169 = vrot.slane %v168, 1
  %v170 = vadd.f32 %v168, %v169
  %v171 = vadd.f32 %v151, %v155
  %v172 = vrot.slane %v171, 4
  %v173 = vadd.f32 %v171, %v172
  %v174 = vrot.slane %v173, 2
  %v175 = vadd.f32 %v173, %v174
  %v176 = vrot.slane %v175, 1
  %v177 = vadd.f32 %v175, %v176
  %v178 = vadd.f32 %v152, %v156
  %v179 = vrot.slane %v178, 4
  %v180 = vadd.f32 %v178, %v179
  %v181 = vrot.slane %v180, 2
  %v182 = vadd.f32 %v180, %v181
  %v183 = vrot.slane %v182, 1
  %v184 = vadd.f32 %v182, %v183
  %v189 = vcombine.low %v163, %v170
  %v190 = vcombine.low %v177, %v184
  %v192 = vunpack.c.l.s4 1966171168
  %v193 = vunpack.c.0.s8 %v192
  %v194 = vlaneseq
  %v195 = vshrl.u32 %v194, 7
  %v196 = vsub.s32 %v193, %v195
  %v197 = vrot.slane %v189, %v196
  %v199 = vunpack.c.l.s4 1966171168
  %v200 = vunpack.c.0.s8 %v199
  %v201 = vlaneseq
  %v202 = vshrl.u32 %v201, 7
  %v203 = vsub.s32 %v200, %v202
  %v204 = vrot.slane %v190, %v203
  %v205 = vcombine.low %v197, %v204
  %v207 = vunpack.c.l.s4 1966171168
  %v208 = vunpack.c.0.s8 %v207
  %v209 = vlaneseq
  %v210 = vshrl.u32 %v209, 7
  %v211 = vsub.s32 %v208, %v210
  %v212 = vrot.slane %v205, %v211
  %v214 = vadd.f32 %v148, %v212
  %215 = vst.msk [vmem:[%s2] sm:$0xf] %vm146, %v214
  // Predicated region
  $region10: #{vertical_inception_forward.4} parent=0 // pred_check
    _
  $region11: #{vertical_inception_forward.4} parent=0 // pred_check_branch
    %217 = sbr.rel (0) target = $region13
  $region12: #{vertical_inception_forward.4} parent=0 // pred_region
    _
  $region13: #{vertical_inception_forward.4} parent=0 // pred_fallthru
    _
  // Predicated region
  $region14: #{vertical_inception_forward.4} parent=0 // pred_check
    _
  $region15: #{vertical_inception_forward.4} parent=0 // pred_check_branch
    %219 = sbr.rel (0) target = $region17
  $region16: #{vertical_inception_forward.4} parent=0 // pred_region
    _
  $region17: #{vertical_inception_forward.4} parent=0 // pred_fallthru
    _
  // Predicated region
  $region18: #{vertical_inception_forward.4} parent=0 // pred_check
    _
  $region19: #{vertical_inception_forward.4} parent=0 // pred_check_branch
    %221 = sbr.rel (0) target = $region21
  $region20: #{vertical_inception_forward.4} parent=0 // pred_region
    _
  $region21: #{vertical_inception_forward.4} parent=0 // pred_fallthru
    _
  // Predicated region
  $region22: #{vertical_inception_forward.4} parent=0 // pred_check
    _
  $region23: #{vertical_inception_forward.4} parent=0 // pred_check_branch
    %223 = sbr.rel (0) target = $region25
  $region24: #{vertical_inception_forward.4} parent=0 // pred_region
    _
  $region25: #{vertical_inception_forward.4} parent=0 // pred_fallthru
    _

// kernel: tile.53
$region0: #{tile.53}
  #allocation0 [shape = 's32[1]{0}', space=sflag, size = 0x4, scoped, tag = 'scoped memory for tile.53']
  %s0 = inlined_call_operand.vmem [shape: f32[8], index: 0, kind: input, shape index: {}]
  %s1 = inlined_call_operand.vmem [shape: f32[64,8], index: 1, kind: output, shape index: {}]
  // Predicated region
  $region2: #{tile.53} parent=0 // pred_check
    _
  $region3: #{tile.53} parent=0 // pred_check_branch
    %3 = sbr.rel (0) target = $region5
  $region4: #{tile.53} parent=0 // pred_region
    _
  $region5: #{tile.53} parent=0 // pred_fallthru
    _
  %v4 = vld [vmem:[%s0] ss:$0 sm:$0xff]
  %5 = vst [vmem:[%s1] sm:$0xff] %v4
  %s6 = scalar_lea.vmem %s1, 8
  %7 = vst [vmem:[%s6] sm:$0xff] %v4
  %s8 = scalar_lea.vmem %s1, 16
  %9 = vst [vmem:[%s8] sm:$0xff] %v4
  %s10 = scalar_lea.vmem %s1, 24
  %11 = vst [vmem:[%s10] sm:$0xff] %v4
  %s12 = scalar_lea.vmem %s1, 32
  %13 = vst [vmem:[%s12] sm:$0xff] %v4
  %s14 = scalar_lea.vmem %s1, 40
  %15 = vst [vmem:[%s14] sm:$0xff] %v4
  %s16 = scalar_lea.vmem %s1, 48
  %17 = vst [vmem:[%s16] sm:$0xff] %v4
  %s18 = scalar_lea.vmem %s1, 56
  %19 = vst [vmem:[%s18] sm:$0xff] %v4

// kernel: tile.54
$region0: #{tile.54}
  %s0 = inlined_call_operand.vmem [shape: f32[64,8], index: 0, kind: input, shape index: {}]
  %s1 = inlined_call_operand.vmem [shape: f32[1,512], index: 1, kind: output, shape index: {}]
  $region1: #{tile.54} parent=0
    #allocation0 [shape = 'u8[16384]{0}', space=vmem, size = 0x4000, scoped, tag = 'scoped mem for output reshape']
    %s2 = smov 3
    %v3 = vld [vmem:[%s0] ss:$16 sm:%s2]
    %s4 = smov 12
    %v5 = vld [vmem:[%s0] ss:$16 sm:%s4]
    %vm6 = vcmask 1043458
    %v7 = vsel %vm6, %v5, %v3
    %vm8 = vcmask 64512
    %9 = vst.msk [vmem:[#allocation0] ss:$8 sm:$0xf] %vm8, %v7
    %s10 = scalar_lea.vmem %s0, 15
    %s11 = smov 3
    %v12 = vld [vmem:[%s10] ss:$16 sm:%s11]
    %s13 = scalar_lea.vmem %s0, 15
    %s14 = smov 12
    %v15 = vld [vmem:[%s13] ss:$16 sm:%s14]
    %vm16 = vcmask 1043458
    %v17 = vsel %vm16, %v15, %v12
    %18 = vrot.lane.b32.xlu0 %v17, 120
    %v19 = vpop.permute.xlu0 %18
    %vm20 = vcmask 1048512
    %21 = vst.msk [vmem:[#allocation0] ss:$8 sm:$0xf] %vm20, %v19
    %s22 = scalar_lea.vmem %s0, 14
    %s23 = smov 3
    %v24 = vld [vmem:[%s22] ss:$16 sm:%s23]
    %s25 = scalar_lea.vmem %s0, 14
    %s26 = smov 12
    %v27 = vld [vmem:[%s25] ss:$16 sm:%s26]
    %vm28 = vcmask 1043458
    %v29 = vsel %vm28, %v27, %v24
    %30 = vrot.lane.b32.xlu0 %v29, 112
    %v31 = vpop.permute.xlu0 %30
    %vm32 = vcmask 982912
    %33 = vst.msk [vmem:[#allocation0] ss:$8 sm:$0xf] %vm32, %v31
    %s34 = scalar_lea.vmem %s0, 13
    %s35 = smov 3
    %v36 = vld [vmem:[%s34] ss:$16 sm:%s35]
    %s37 = scalar_lea.vmem %s0, 13
    %s38 = smov 12
    %v39 = vld [vmem:[%s37] ss:$16 sm:%s38]
    %vm40 = vcmask 1043458
    %v41 = vsel %vm40, %v39, %v36
    %42 = vrot.lane.b32.xlu0 %v41, 104
    %v43 = vpop.permute.xlu0 %42
    %vm44 = vcmask 917312
    %45 = vst.msk [vmem:[#allocation0] ss:$8 sm:$0xf] %vm44, %v43
    %s46 = scalar_lea.vmem %s0, 12
    %s47 = smov 3
    %v48 = vld [vmem:[%s46] ss:$16 sm:%s47]
    %s49 = scalar_lea.vmem %s0, 12
    %s50 = smov 12
    %v51 = vld [vmem:[%s49] ss:$16 sm:%s50]
    %vm52 = vcmask 1043458
    %v53 = vsel %vm52, %v51, %v48
    %54 = vrot.lane.b32.xlu0 %v53, 96
    %v55 = vpop.permute.xlu0 %54
    %vm56 = vcmask 851712
    %57 = vst.msk [vmem:[#allocation0] ss:$8 sm:$0xf] %vm56, %v55
    %s58 = scalar_lea.vmem %s0, 11
    %s59 = smov 3
    %v60 = vld [vmem:[%s58] ss:$16 sm:%s59]
    %s61 = scalar_lea.vmem %s0, 11
    %s62 = smov 12
    %v63 = vld [vmem:[%s61] ss:$16 sm:%s62]
    %vm64 = vcmask 1043458
    %v65 = vsel %vm64, %v63, %v60
    %66 = vrot.lane.b32.xlu0 %v65, 88
    %v67 = vpop.permute.xlu0 %66
    %vm68 = vcmask 786112
    %69 = vst.msk [vmem:[#allocation0] ss:$8 sm:$0xf] %vm68, %v67
    %s70 = scalar_lea.vmem %s0, 10
    %s71 = smov 3
    %v72 = vld [vmem:[%s70] ss:$16 sm:%s71]
    %s73 = scalar_lea.vmem %s0, 10
    %s74 = smov 12
    %v75 = vld [vmem:[%s73] ss:$16 sm:%s74]
    %vm76 = vcmask 1043458
    %v77 = vsel %vm76, %v75, %v72
    %78 = vrot.lane.b32.xlu0 %v77, 80
    %v79 = vpop.permute.xlu0 %78
    %vm80 = vcmask 720512
    %81 = vst.msk [vmem:[#allocation0] ss:$8 sm:$0xf] %vm80, %v79
    %s82 = scalar_lea.vmem %s0, 9
    %s83 = smov 3
    %v84 = vld [vmem:[%s82] ss:$16 sm:%s83]
    %s85 = scalar_lea.vmem %s0, 9
    %s86 = smov 12
    %v87 = vld [vmem:[%s85] ss:$16 sm:%s86]
    %vm88 = vcmask 1043458
    %v89 = vsel %vm88, %v87, %v84
    %90 = vrot.lane.b32.xlu0 %v89, 72
    %v91 = vpop.permute.xlu0 %90
    %vm92 = vcmask 654912
    %93 = vst.msk [vmem:[#allocation0] ss:$8 sm:$0xf] %vm92, %v91
    %s94 = scalar_lea.vmem %s0, 8
    %s95 = smov 3
    %v96 = vld [vmem:[%s94] ss:$16 sm:%s95]
    %s97 = scalar_lea.vmem %s0, 8
    %s98 = smov 12
    %v99 = vld [vmem:[%s97] ss:$16 sm:%s98]
    %vm100 = vcmask 1043458
    %v101 = vsel %vm100, %v99, %v96
    %102 = vrot.lane.b32.xlu0 %v101, 64
    %v103 = vpop.permute.xlu0 %102
    %vm104 = vcmask 589312
    %105 = vst.msk [vmem:[#allocation0] ss:$8 sm:$0xf] %vm104, %v103
    %s106 = scalar_lea.vmem %s0, 7
    %s107 = smov 3
    %v108 = vld [vmem:[%s106] ss:$16 sm:%s107]
    %s109 = scalar_lea.vmem %s0, 7
    %s110 = smov 12
    %v111 = vld [vmem:[%s109] ss:$16 sm:%s110]
    %vm112 = vcmask 1043458
    %v113 = vsel %vm112, %v111, %v108
    %114 = vrot.lane.b32.xlu0 %v113, 56
    %v115 = vpop.permute.xlu0 %114
    %vm116 = vcmask 523712
    %117 = vst.msk [vmem:[#allocation0] ss:$8 sm:$0xf] %vm116, %v115
    %s118 = scalar_lea.vmem %s0, 6
    %s119 = smov 3
    %v120 = vld [vmem:[%s118] ss:$16 sm:%s119]
    %s121 = scalar_lea.vmem %s0, 6
    %s122 = smov 12
    %v123 = vld [vmem:[%s121] ss:$16 sm:%s122]
    %vm124 = vcmask 1043458
    %v125 = vsel %vm124, %v123, %v120
    %126 = vrot.lane.b32.xlu0 %v125, 48
    %v127 = vpop.permute.xlu0 %126
    %vm128 = vcmask 458112
    %129 = vst.msk [vmem:[#allocation0] ss:$8 sm:$0xf] %vm128, %v127
    %s130 = scalar_lea.vmem %s0, 5
    %s131 = smov 3
    %v132 = vld [vmem:[%s130] ss:$16 sm:%s131]
    %s133 = scalar_lea.vmem %s0, 5
    %s134 = smov 12
    %v135 = vld [vmem:[%s133] ss:$16 sm:%s134]
    %vm136 = vcmask 1043458
    %v137 = vsel %vm136, %v135, %v132
    %138 = vrot.lane.b32.xlu0 %v137, 40
    %v139 = vpop.permute.xlu0 %138
    %vm140 = vcmask 392512
    %141 = vst.msk [vmem:[#allocation0] ss:$8 sm:$0xf] %vm140, %v139
    %s142 = scalar_lea.vmem %s0, 4
    %s143 = smov 3
    %v144 = vld [vmem:[%s142] ss:$16 sm:%s143]
    %s145 = scalar_lea.vmem %s0, 4
    %s146 = smov 12
    %v147 = vld [vmem:[%s145] ss:$16 sm:%s146]
    %vm148 = vcmask 1043458
    %v149 = vsel %vm148, %v147, %v144
    %150 = vrot.lane.b32.xlu0 %v149, 32
    %v151 = vpop.permute.xlu0 %150
    %vm152 = vcmask 326912
    %153 = vst.msk [vmem:[#allocation0] ss:$8 sm:$0xf] %vm152, %v151
    %s154 = scalar_lea.vmem %s0, 3
    %s155 = smov 3
    %v156 = vld [vmem:[%s154] ss:$16 sm:%s155]
    %s157 = scalar_lea.vmem %s0, 3
    %s158 = smov 12
    %v159 = vld [vmem:[%s157] ss:$16 sm:%s158]
    %vm160 = vcmask 1043458
    %v161 = vsel %vm160, %v159, %v156
    %162 = vrot.lane.b32.xlu0 %v161, 24
    %v163 = vpop.permute.xlu0 %162
    %vm164 = vcmask 261312
    %165 = vst.msk [vmem:[#allocation0] ss:$8 sm:$0xf] %vm164, %v163
    %s166 = scalar_lea.vmem %s0, 2
    %s167 = smov 3
    %v168 = vld [vmem:[%s166] ss:$16 sm:%s167]
    %s169 = scalar_lea.vmem %s0, 2
    %s170 = smov 12
    %v171 = vld [vmem:[%s169] ss:$16 sm:%s170]
    %vm172 = vcmask 1043458
    %v173 = vsel %vm172, %v171, %v168
    %174 = vrot.lane.b32.xlu0 %v173, 16
    %v175 = vpop.permute.xlu0 %174
    %vm176 = vcmask 195712
    %177 = vst.msk [vmem:[#allocation0] ss:$8 sm:$0xf] %vm176, %v175
    %s178 = scalar_lea.vmem %s0, 1
    %s179 = smov 3
    %v180 = vld [vmem:[%s178] ss:$16 sm:%s179]
    %s181 = scalar_lea.vmem %s0, 1
    %s182 = smov 12
    %v183 = vld [vmem:[%s181] ss:$16 sm:%s182]
    %vm184 = vcmask 1043458
    %v185 = vsel %vm184, %v183, %v180
    %186 = vrot.lane.b32.xlu0 %v185, 8
    %v187 = vpop.permute.xlu0 %186
    %vm188 = vcmask 130112
    %189 = vst.msk [vmem:[#allocation0] ss:$8 sm:$0xf] %vm188, %v187
    %s191 = sshllo.u32 0, 1
    %v193 = vld [vmem:[#allocation0] sm:%s191]
    %s194 = sshllo.u32 0, 1
    %195 = vst [vmem:[%s1] sm:%s194] %v193
    %s196 = scalar_lea.vmem [#allocation0], 8
    %v197 = vld [vmem:[%s196] sm:%s191]
    %s198 = sshllo.u32 0, 1
    %s199 = scalar_lea.vmem %s1, 1
    %200 = vst [vmem:[%s199] sm:%s198] %v197
    %s201 = scalar_lea.vmem [#allocation0], 16
    %v202 = vld [vmem:[%s201] sm:%s191]
    %s203 = sshllo.u32 0, 1
    %s204 = smul.addr 1, 2
    %s205 = scalar_lea.vmem %s1, %s204
    %206 = vst [vmem:[%s205] sm:%s203] %v202
    %s207 = scalar_lea.vmem [#allocation0], 24
    %v208 = vld [vmem:[%s207] sm:%s191]
    %s209 = sshllo.u32 0, 1
    %s210 = smul.addr 1, 3
    %s211 = scalar_lea.vmem %s1, %s210
    %212 = vst [vmem:[%s211] sm:%s209] %v208

// kernel: vertical_inception_forward.5
$region0: #{vertical_inception_forward.5}
  #allocation0 [shape = 'u32[]', space=smem, size = 0x4, offset = 0x4, fixed_abs, tag = 'smem constant byte address 0x4 - core index']
  #allocation1 [shape = 'u32[144,128]{1,0:T(1,128)}', space=vmem, size = 0x12000, scoped, tag = 'internal scratch']
  %s0 = inlined_call_operand.vmem [shape: f32[16,2048], index: 0, kind: input, shape index: {}]
  %s1 = inlined_call_operand.vmem [shape: f32[1,512], index: 1, kind: input, shape index: {}]
  %s2 = inlined_call_operand.vmem [shape: f32[1,512], index: 2, kind: input, shape index: {}]
  %s3 = inlined_call_operand.vmem [shape: f32[16,512], index: 3, kind: output, shape index: {}]
  %s4 = sld [smem:[#allocation0]]
  $region22: #{vertical_inception_forward.5} parent=0
    _
  %s6 = ssub.s32 1, %s4
  %s7 = scalar_select 0, %s6, %s4
  // Predicated region
  $region2: #{vertical_inception_forward.5} parent=0 // pred_check
    _
  $region3: #{vertical_inception_forward.5} parent=0 // pred_check_branch
    %9 = sbr.rel (0) target = $region5
  $region4: #{vertical_inception_forward.5} parent=0 // pred_region
    _
  $region5: #{vertical_inception_forward.5} parent=0 // pred_fallthru
    _
  // Predicated region
  $region6: #{vertical_inception_forward.5} parent=0 // pred_check
    _
  $region7: #{vertical_inception_forward.5} parent=0 // pred_check_branch
    %11 = sbr.rel (0) target = $region9
  $region8: #{vertical_inception_forward.5} parent=0 // pred_region
    _
  $region9: #{vertical_inception_forward.5} parent=0 // pred_fallthru
    _
  // Predicated region
  $region10: #{vertical_inception_forward.5} parent=0 // pred_check
    _
  $region11: #{vertical_inception_forward.5} parent=0 // pred_check_branch
    %13 = sbr.rel (0) target = $region13
  $region12: #{vertical_inception_forward.5} parent=0 // pred_region
    _
  $region13: #{vertical_inception_forward.5} parent=0 // pred_fallthru
    _
  %v14 = vld [vmem:[%s0] sm:$0xff]
  %v15 = vld [vmem:[%s0 + $0x8] sm:$0xff]
  %v16 = vld [vmem:[%s0 + $0x10] sm:$0xff]
  %v17 = vld [vmem:[%s0 + $0x18] sm:$0xff]
  %v18 = vld [vmem:[%s0 + $0x20] sm:$0xff]
  %v19 = vld [vmem:[%s0 + $0x28] sm:$0xff]
  %v20 = vld [vmem:[%s0 + $0x30] sm:$0xff]
  %v21 = vld [vmem:[%s0 + $0x38] sm:$0xff]
  %v22 = vld [vmem:[%s0 + $0x40] sm:$0xff]
  %v23 = vld [vmem:[%s0 + $0x48] sm:$0xff]
  %v24 = vld [vmem:[%s0 + $0x50] sm:$0xff]
  %v25 = vld [vmem:[%s0 + $0x58] sm:$0xff]
  %v26 = vld [vmem:[%s0 + $0x60] sm:$0xff]
  %v27 = vld [vmem:[%s0 + $0x68] sm:$0xff]
  %v28 = vld [vmem:[%s0 + $0x70] sm:$0xff]
  %v29 = vld [vmem:[%s0 + $0x78] sm:$0xff]
  %v30 = vld [vmem:[%s0 + $0x80] sm:$0xff]
  %v31 = vld [vmem:[%s0 + $0x88] sm:$0xff]
  %v32 = vld [vmem:[%s0 + $0x90] sm:$0xff]
  %v33 = vld [vmem:[%s0 + $0x98] sm:$0xff]
  %v34 = vld [vmem:[%s0 + $0xa0] sm:$0xff]
  %v35 = vld [vmem:[%s0 + $0xa8] sm:$0xff]
  %v36 = vld [vmem:[%s0 + $0xb0] sm:$0xff]
  %v37 = vld [vmem:[%s0 + $0xb8] sm:$0xff]
  %v38 = vld [vmem:[%s0 + $0xc0] sm:$0xff]
  %v39 = vld [vmem:[%s0 + $0xc8] sm:$0xff]
  %v40 = vld [vmem:[%s0 + $0xd0] sm:$0xff]
  %v41 = vld [vmem:[%s0 + $0xd8] sm:$0xff]
  %v42 = vld [vmem:[%s0 + $0xe0] sm:$0xff]
  %v43 = vld [vmem:[%s0 + $0xe8] sm:$0xff]
  %v44 = vld [vmem:[%s0 + $0xf0] sm:$0xff]
  %v45 = vld [vmem:[%s0 + $0xf8] sm:$0xff]
  %v46 = vmax.f32 %v14, 0.0
  %v47 = vmax.f32 %v15, 0.0
  %v48 = vmax.f32 %v16, 0.0
  %v49 = vmax.f32 %v17, 0.0
  %v50 = vmax.f32 %v30, 0.0
  %v51 = vmax.f32 %v31, 0.0
  %v52 = vmax.f32 %v32, 0.0
  %v53 = vmax.f32 %v33, 0.0
  %v54 = vmax.f32 %v18, 0.0
  %v55 = vmax.f32 %v19, 0.0
  %v56 = vmax.f32 %v20, 0.0
  %v57 = vmax.f32 %v21, 0.0
  %v58 = vmax.f32 %v34, 0.0
  %v59 = vmax.f32 %v35, 0.0
  %v60 = vmax.f32 %v36, 0.0
  %v61 = vmax.f32 %v37, 0.0
  %v62 = vadd.f32 %v46, %v54
  %v63 = vadd.f32 %v47, %v55
  %v64 = vadd.f32 %v48, %v56
  %v65 = vadd.f32 %v49, %v57
  %v66 = vadd.f32 %v50, %v58
  %v67 = vadd.f32 %v51, %v59
  %v68 = vadd.f32 %v52, %v60
  %v69 = vadd.f32 %v53, %v61
  %v70 = vmax.f32 %v22, 0.0
  %v71 = vmax.f32 %v23, 0.0
  %v72 = vmax.f32 %v24, 0.0
  %v73 = vmax.f32 %v25, 0.0
  %v74 = vmax.f32 %v38, 0.0
  %v75 = vmax.f32 %v39, 0.0
  %v76 = vmax.f32 %v40, 0.0
  %v77 = vmax.f32 %v41, 0.0
  %v78 = vadd.f32 %v62, %v70
  %v79 = vadd.f32 %v63, %v71
  %v80 = vadd.f32 %v64, %v72
  %v81 = vadd.f32 %v65, %v73
  %v82 = vadd.f32 %v66, %v74
  %v83 = vadd.f32 %v67, %v75
  %v84 = vadd.f32 %v68, %v76
  %v85 = vadd.f32 %v69, %v77
  %v86 = vld [vmem:[%s1] sm:$0xf]
  %v88 = vlaneseq
  %v89 = vshrl.u32 %v88, 7
  %v90 = vsub.s32 0, %v89
  %v91 = vrot.slane %v86, %v90
  %v92 = vlaneseq
  %v93 = vshrl.u32 %v92, 7
  %v94 = vsub.s32 1, %v93
  %v95 = vrot.slane %v86, %v94
  %v96 = vlaneseq
  %v97 = vshrl.u32 %v96, 7
  %v98 = vsub.s32 2, %v97
  %v99 = vrot.slane %v86, %v98
  %v100 = vlaneseq
  %v101 = vshrl.u32 %v100, 7
  %v102 = vsub.s32 3, %v101
  %v103 = vrot.slane %v86, %v102
  %v108 = vmul.f32 %v78, %v91
  %v109 = vmul.f32 %v79, %v95
  %v110 = vmul.f32 %v80, %v99
  %v111 = vmul.f32 %v81, %v103
  %v112 = vmul.f32 %v82, %v91
  %v113 = vmul.f32 %v83, %v95
  %v114 = vmul.f32 %v84, %v99
  %v115 = vmul.f32 %v85, %v103
  %v116 = vld [vmem:[%s2] sm:$0xf]
  %v118 = vlaneseq
  %v119 = vshrl.u32 %v118, 7
  %v120 = vsub.s32 0, %v119
  %v121 = vrot.slane %v116, %v120
  %v122 = vlaneseq
  %v123 = vshrl.u32 %v122, 7
  %v124 = vsub.s32 1, %v123
  %v125 = vrot.slane %v116, %v124
  %v126 = vlaneseq
  %v127 = vshrl.u32 %v126, 7
  %v128 = vsub.s32 2, %v127
  %v129 = vrot.slane %v116, %v128
  %v130 = vlaneseq
  %v131 = vshrl.u32 %v130, 7
  %v132 = vsub.s32 3, %v131
  %v133 = vrot.slane %v116, %v132
  %v138 = vadd.f32 %v108, %v121
  %v139 = vadd.f32 %v109, %v125
  %v140 = vadd.f32 %v110, %v129
  %v141 = vadd.f32 %v111, %v133
  %v142 = vadd.f32 %v112, %v121
  %v143 = vadd.f32 %v113, %v125
  %v144 = vadd.f32 %v114, %v129
  %v145 = vadd.f32 %v115, %v133
  %v146 = vadd.f32 %v138, %v26
  %v147 = vadd.f32 %v139, %v27
  %v148 = vadd.f32 %v140, %v28
  %v149 = vadd.f32 %v141, %v29
  %v150 = vadd.f32 %v142, %v42
  %v151 = vadd.f32 %v143, %v43
  %v152 = vadd.f32 %v144, %v44
  %v153 = vadd.f32 %v145, %v45
  %v154 = vmax.f32 %v146, 0.0
  %v155 = vmax.f32 %v147, 0.0
  %v156 = vmax.f32 %v148, 0.0
  %v157 = vmax.f32 %v149, 0.0
  %v158 = vmax.f32 %v150, 0.0
  %v159 = vmax.f32 %v151, 0.0
  %v160 = vmax.f32 %v152, 0.0
  %v161 = vmax.f32 %v153, 0.0
  %162 = vst [vmem:[%s3] sm:$0xff] %v154
  %163 = vst [vmem:[%s3 + $0x8] sm:$0xff] %v155
  %164 = vst [vmem:[%s3 + $0x10] sm:$0xff] %v156
  %165 = vst [vmem:[%s3 + $0x18] sm:$0xff] %v157
  %166 = vst [vmem:[%s3 + $0x20] sm:$0xff] %v158
  %167 = vst [vmem:[%s3 + $0x28] sm:$0xff] %v159
  %168 = vst [vmem:[%s3 + $0x30] sm:$0xff] %v160
  %169 = vst [vmem:[%s3 + $0x38] sm:$0xff] %v161
  // Predicated region
  $region14: #{vertical_inception_forward.5} parent=0 // pred_check
    _
  $region15: #{vertical_inception_forward.5} parent=0 // pred_check_branch
    %171 = sbr.rel (0) target = $region17
  $region16: #{vertical_inception_forward.5} parent=0 // pred_region
    _
  $region17: #{vertical_inception_forward.5} parent=0 // pred_fallthru
    _
  // Predicated region
  $region18: #{vertical_inception_forward.5} parent=0 // pred_check
    _
  $region19: #{vertical_inception_forward.5} parent=0 // pred_check_branch
    %173 = sbr.rel (0) target = $region21
  $region20: #{vertical_inception_forward.5} parent=0 // pred_region
    _
  $region21: #{vertical_inception_forward.5} parent=0 // pred_fallthru
    _

</llo_original>
